<compile_context>
chip_gen: v6e
topology: v6e:2x2x1
jax: 0.10.0
libtpu: 0.0.40
codegen_flags: <defaults>
</compile_context>

<pallas_src>
import jax
import jax.numpy as jnp
from jax.experimental import pallas as pl
from jax.experimental.pallas import tpu as pltpu

LANE = 128          # all channel dims padded to one full lane tile
B_PAD = 16          # graph (batch) dim padded to a full bf16 sublane tile
NEG_INF = -1e30     # masks padded logit columns out of the log_softmax


# ----------------------------------------------------------------------------
# Fused Pallas kernel: 3x (GraphConv+BN+ReLU) -> pool -> MLP -> log_softmax
# ----------------------------------------------------------------------------
def asap_fused_kernel(a_ref, x_ref, p_ref,
                      wr1_ref, wo1_ref, s1_ref, b1_ref,
                      wr2_ref, wo2_ref, s2_ref, b2_ref,
                      wr3_ref, wo3_ref, s3_ref, b3_ref,
                      wl1_ref, bl1_ref, wl2_ref, bl2_ref,
                      o_ref):
    # a_ref  : (Np, Np)   bf16  row-normalized adjacency (mean aggregation)
    # x_ref  : (Np, 128)  bf16  node features, channel/node padded
    # p_ref  : (16, Np)   bf16  global-mean-pool matrix, batch padded
    # wr*/wo*: (128, 128) bf16  W_rel / W_root (unscaled), channel padded
    # s*/b*  : (1, 128)   f32   folded eval-BN scale / bias, channel padded
    # wl*/bl*: padded MLP head (bl2 padded columns hold -1e30 softmax mask)
    # o_ref  : (16, 128)  f32   log_softmax output (slice [:B, :C] outside)
    a = a_ref[...]
    x = x_ref[...]

    def conv_bn_relu(x_b, wr_ref, wo_ref, s_ref, b_ref):
        # mean aggregation on the MXU, f32 accumulation
        agg = jnp.dot(a, x_b, preferred_element_type=jnp.float32)
        # two accumulating dots (no (N,256) concat buffer)
        h = jnp.dot(agg.astype(jnp.bfloat16), wr_ref[...],
                    preferred_element_type=jnp.float32)
        h = h + jnp.dot(x_b, wo_ref[...], preferred_element_type=jnp.float32)
        # eval-BN applied in f32 on the VPU (scale/bias folded wrapper-side)
        h = h * s_ref[...] + b_ref[...]
        return jnp.maximum(h, 0.0).astype(jnp.bfloat16)

    # MeshPool is identity -> same adjacency reused across the three layers.
    x = conv_bn_relu(x, wr1_ref, wo1_ref, s1_ref, b1_ref)
    x = conv_bn_relu(x, wr2_ref, wo2_ref, s2_ref, b2_ref)
    x = conv_bn_relu(x, wr3_ref, wo3_ref, s3_ref, b3_ref)

    # global_mean_pool: (16, Np) @ (Np, 128)
    g = jnp.dot(p_ref[...], x, preferred_element_type=jnp.float32)
    # lin1 + ReLU   (dropout p=0.7 is identity in eval mode)
    h = jnp.maximum(
        jnp.dot(g.astype(jnp.bfloat16), wl1_ref[...],
                preferred_element_type=jnp.float32) + bl1_ref[...], 0.0)
    # lin2; padded class columns carry a -1e30 bias so they vanish in softmax
    logits = jnp.dot(h.astype(jnp.bfloat16), wl2_ref[...],
                     preferred_element_type=jnp.float32) + bl2_ref[...]
    # log_softmax(dim=-1), numerically stable
    m = jnp.max(logits, axis=-1, keepdims=True)
    s = logits - m
    lse = jnp.log(jnp.sum(jnp.exp(s), axis=-1, keepdims=True))
    o_ref[...] = s - lse


def _full_spec(shape):
    # whole-array block (legal: block == full array dims)
    return pl.BlockSpec(shape, lambda i: tuple(0 for _ in shape))


def asap_pallas(A, X0, P, layer_params, head_params):
    (wr1, wo1, s1, b1), (wr2, wo2, s2, b2), (wr3, wo3, s3, b3) = layer_params
    (wl1, bl1), (wl2, bl2) = head_params
    args = (A, X0, P,
            wr1, wo1, s1, b1, wr2, wo2, s2, b2, wr3, wo3, s3, b3,
            wl1, bl1, wl2, bl2)

    # Size the scoped-VMEM limit from the real footprint (2x for the
    # pipeline's double buffers + slack), capped below v7x's 64 MiB physical.
    total_bytes = sum(int(a.size) * a.dtype.itemsize for a in args)
    total_bytes += B_PAD * LANE * 4
    vmem_limit = min(2 * total_bytes + (2 << 20), 60 << 20)

    return pl.pallas_call(
        asap_fused_kernel,
        out_shape=jax.ShapeDtypeStruct((B_PAD, LANE), jnp.float32),
        grid=(1,),
        in_specs=[_full_spec(a.shape) for a in args],
        out_specs=_full_spec((B_PAD, LANE)),
        compiler_params=pltpu.CompilerParams(
            dimension_semantics=("arbitrary",),
            vmem_limit_bytes=vmem_limit),
    )(*args)


# ----------------------------------------------------------------------------
# Wrapper-side glue: dense adjacency / pooling (built in bf16, node-padded),
# BN folding (f32 scale/bias, bf16 unscaled weights), channel padding.
# ----------------------------------------------------------------------------
def pad_nodes(n):
    return max(LANE, ((n + LANE - 1) // LANE) * LANE)


def build_mean_adj_bf16(edge_index, num_nodes, num_nodes_pad):
    # PyG convention: messages flow src -> dst, aggregated (mean) at dst.
    # Mean aggregation == row-normalized adjacency. Built directly at padded
    # size in bf16 (zero padded rows/cols are a mathematical no-op).
    src, dst = edge_index[0], edge_index[1]
    deg = jnp.zeros((num_nodes,), jnp.float32).at[dst].add(1.0)
    inv_deg = jnp.where(deg > 0, 1.0 / jnp.maximum(deg, 1.0), 0.0)
    vals = inv_deg[dst].astype(jnp.bfloat16)
    A = jnp.zeros((num_nodes_pad, num_nodes_pad), jnp.bfloat16)
    return A.at[dst, src].add(vals)


def build_mean_pool_bf16(batch, num_nodes, num_nodes_pad):
    cnt = jnp.zeros((B_PAD,), jnp.float32).at[batch].add(1.0)
    inv = jnp.where(cnt > 0, 1.0 / jnp.maximum(cnt, 1.0), 0.0)
    P = jnp.zeros((B_PAD, num_nodes_pad), jnp.bfloat16)
    return P.at[batch, jnp.arange(num_nodes)].set(inv[batch].astype(jnp.bfloat16))


def pad_to(x, shape):
    return jnp.pad(x, [(0, t - s) for s, t in zip(x.shape, shape)])


def make_layer_params(conv, bn, eps=1e-5):
    Wrel_T, brel, Wroot_T = conv
    gamma, beta, rmean, rvar = bn
    scale = gamma * jax.lax.rsqrt(rvar + eps)              # (1, Cout) f32
    bias = (brel - rmean) * scale + beta                   # (1, Cout) f32
    return (pad_to(Wrel_T, (LANE, LANE)).astype(jnp.bfloat16),
            pad_to(Wroot_T, (LANE, LANE)).astype(jnp.bfloat16),
            pad_to(scale, (1, LANE)),
            pad_to(bias, (1, LANE)))


def make_head_params(lin1, lin2, num_classes):
    W1_T, b1 = lin1
    W2_T, b2 = lin2
    wl1 = pad_to(W1_T, (LANE, LANE)).astype(jnp.bfloat16)
    bl1 = pad_to(b1, (1, LANE))
    wl2 = pad_to(W2_T, (LANE, LANE)).astype(jnp.bfloat16)
    bl2 = jnp.concatenate(
        [b2, jnp.full((1, LANE - num_classes), NEG_INF, jnp.float32)], axis=1)
    return (wl1, bl1), (wl2, bl2)


def asap_forward(params, x, edge_index, batch, num_graphs, num_classes):
    N = x.shape[0]
    Np = pad_nodes(N)
    # Adjacency / pool matrices built ONCE (MeshPool is identity).
    A = build_mean_adj_bf16(edge_index, N, Np)
    X0 = pad_to(x, (Np, LANE)).astype(jnp.bfloat16)
    P = build_mean_pool_bf16(batch, N, Np)

    layers = (make_layer_params(params["conv1"], params["bn1"]),
              make_layer_params(params["conv2"], params["bn2"]),
              make_layer_params(params["conv3"], params["bn3"]))
    head = make_head_params(params["lin1"], params["lin2"], num_classes)

    out = asap_pallas(A, X0, P, layers, head)
    return out[:num_graphs, :num_classes]


# ----------------------------------------------------------------------------
# Pure-JAX f32 reference (for validation)
# ----------------------------------------------------------------------------
def build_mean_adj_f32(edge_index, num_nodes):
    src, dst = edge_index[0], edge_index[1]
    A = jnp.zeros((num_nodes, num_nodes), jnp.float32).at[dst, src].add(1.0)
    deg = jnp.sum(A, axis=1, keepdims=True)
    return jnp.where(deg > 0, A / jnp.maximum(deg, 1.0), 0.0)


def asap_reference(params, x, edge_index, batch, num_graphs):
    A = build_mean_adj_f32(edge_index, x.shape[0])

    def layer(xv, conv, bn):
        Wrel_T, brel, Wroot_T = conv
        gamma, beta, rmean, rvar = bn
        out = (A @ xv) @ Wrel_T + brel + xv @ Wroot_T
        out = (out - rmean) * jax.lax.rsqrt(rvar + 1e-5) * gamma + beta
        return jnp.maximum(out, 0.0)

    x = layer(x, params["conv1"], params["bn1"])
    x = layer(x, params["conv2"], params["bn2"])
    x = layer(x, params["conv3"], params["bn3"])
    onehot = (batch[None, :] == jnp.arange(num_graphs)[:, None]).astype(jnp.float32)
    P = onehot / jnp.maximum(jnp.sum(onehot, axis=1, keepdims=True), 1.0)
    g = P @ x
    W1_T, b1 = params["lin1"]
    W2_T, b2 = params["lin2"]
    h = jnp.maximum(g @ W1_T + b1, 0.0)
    logits = h @ W2_T + b2
    return jax.nn.log_softmax(logits, axis=-1)


# ----------------------------------------------------------------------------
# Parameter init (PyTorch-Linear-style uniform)
# ----------------------------------------------------------------------------
def init_linear(key, fan_in, fan_out):
    k1, k2 = jax.random.split(key)
    bound = 1.0 / jnp.sqrt(float(fan_in))
    W_T = jax.random.uniform(k1, (fan_in, fan_out), jnp.float32, -bound, bound)
    b = jax.random.uniform(k2, (1, fan_out), jnp.float32, -bound, bound)
    return W_T, b


def init_graphconv(key, cin, cout):
    k1, k2 = jax.random.split(key)
    Wrel_T, brel = init_linear(k1, cin, cout)
    Wroot_T, _ = init_linear(k2, cin, cout)
    return Wrel_T, brel, Wroot_T


def init_bn(key, c):
    k1, k2 = jax.random.split(key)
    gamma = 1.0 + 0.1 * jax.random.normal(k1, (1, c), jnp.float32)
    beta = 0.1 * jax.random.normal(k2, (1, c), jnp.float32)
    rmean = jnp.zeros((1, c), jnp.float32)
    rvar = jnp.ones((1, c), jnp.float32)
    return gamma, beta, rmean, rvar


# ----------------------------------------------------------------------------
if __name__ == "__main__":
    num_classes = 6
    num_input_channels = 4
    hidden = 64
    num_graphs = 2
    nodes_per_graph = 32
    N = num_graphs * nodes_per_graph
    edges_per_graph = 128

    key = jax.random.PRNGKey(0)
    keys = jax.random.split(key, 12)

    x = jax.random.normal(keys[0], (N, num_input_channels), jnp.float32)
    src0 = jax.random.randint(keys[1], (edges_per_graph,), 0, nodes_per_graph)
    dst0 = jax.random.randint(keys[2], (edges_per_graph,), 0, nodes_per_graph)
    src1 = jax.random.randint(keys[3], (edges_per_graph,), 0, nodes_per_graph) + nodes_per_graph
    dst1 = jax.random.randint(keys[4], (edges_per_graph,), 0, nodes_per_graph) + nodes_per_graph
    edge_index = jnp.stack([jnp.concatenate([src0, src1]),
                            jnp.concatenate([dst0, dst1])], axis=0)
    batch = jnp.concatenate([jnp.zeros((nodes_per_graph,), jnp.int32),
                             jnp.ones((nodes_per_graph,), jnp.int32)])

    params = {
        "conv1": init_graphconv(keys[5], num_input_channels, 16),
        "bn1": init_bn(keys[6], 16),
        "conv2": init_graphconv(keys[7], 16, 32),
        "bn2": init_bn(keys[8], 32),
        "conv3": init_graphconv(keys[9], 32, 64),
        "bn3": init_bn(keys[10], 64),
        "lin1": init_linear(keys[11], hidden, hidden),
        "lin2": init_linear(jax.random.PRNGKey(1), hidden, num_classes),
    }

    out = asap_forward(params, x, edge_index, batch, num_graphs, num_classes)
    out = jax.block_until_ready(out)

    assert out.shape == (num_graphs, num_classes)
    # log_softmax rows must exponentiate-sum to ~1
    assert jnp.allclose(jnp.sum(jnp.exp(out), axis=-1), 1.0, atol=1e-3)
    # match the f32 pure-JAX reference (bf16 operands, f32 accumulation)
    ref = asap_reference(params, x, edge_index, batch, num_graphs)
    assert jnp.allclose(out, ref, atol=1e-1), float(jnp.max(jnp.abs(out - ref)))
    print("KERNEL_OK")
</pallas_src>

<mosaic_0001>
module attributes {stable_mosaic.version = 11 : i64} {
  func.func @asap_fused_kernel(%arg0: i32, %arg1: memref<128x128xbf16, #tpu.memory_space<vmem>>, %arg2: memref<128x128xbf16, #tpu.memory_space<vmem>>, %arg3: memref<16x128xbf16, #tpu.memory_space<vmem>>, %arg4: memref<128x128xbf16, #tpu.memory_space<vmem>>, %arg5: memref<128x128xbf16, #tpu.memory_space<vmem>>, %arg6: memref<1x128xf32, #tpu.memory_space<vmem>>, %arg7: memref<1x128xf32, #tpu.memory_space<vmem>>, %arg8: memref<128x128xbf16, #tpu.memory_space<vmem>>, %arg9: memref<128x128xbf16, #tpu.memory_space<vmem>>, %arg10: memref<1x128xf32, #tpu.memory_space<vmem>>, %arg11: memref<1x128xf32, #tpu.memory_space<vmem>>, %arg12: memref<128x128xbf16, #tpu.memory_space<vmem>>, %arg13: memref<128x128xbf16, #tpu.memory_space<vmem>>, %arg14: memref<1x128xf32, #tpu.memory_space<vmem>>, %arg15: memref<1x128xf32, #tpu.memory_space<vmem>>, %arg16: memref<128x128xbf16, #tpu.memory_space<vmem>>, %arg17: memref<1x128xf32, #tpu.memory_space<vmem>>, %arg18: memref<128x128xbf16, #tpu.memory_space<vmem>>, %arg19: memref<1x128xf32, #tpu.memory_space<vmem>>, %arg20: memref<16x128xf32, #tpu.memory_space<vmem>>) attributes {dimension_semantics = [#tpu.dimension_semantics<arbitrary>], iteration_bounds = array<i64: 1>, scalar_prefetch = 0 : i64, scratch_operands = 0 : i64, tpu.core_type = #tpu.core_type<tc>, window_params = [{pipeline_mode = #tpu.pipeline_mode<synchronous>, transform_indices = @transform_0, window_bounds = array<i64: 128, 128>}, {pipeline_mode = #tpu.pipeline_mode<synchronous>, transform_indices = @transform_1, window_bounds = array<i64: 128, 128>}, {pipeline_mode = #tpu.pipeline_mode<synchronous>, transform_indices = @transform_2, window_bounds = array<i64: 16, 128>}, {pipeline_mode = #tpu.pipeline_mode<synchronous>, transform_indices = @transform_3, window_bounds = array<i64: 128, 128>}, {pipeline_mode = #tpu.pipeline_mode<synchronous>, transform_indices = @transform_4, window_bounds = array<i64: 128, 128>}, {pipeline_mode = #tpu.pipeline_mode<synchronous>, transform_indices = @transform_5, window_bounds = array<i64: 1, 128>}, {pipeline_mode = #tpu.pipeline_mode<synchronous>, transform_indices = @transform_6, window_bounds = array<i64: 1, 128>}, {pipeline_mode = #tpu.pipeline_mode<synchronous>, transform_indices = @transform_7, window_bounds = array<i64: 128, 128>}, {pipeline_mode = #tpu.pipeline_mode<synchronous>, transform_indices = @transform_8, window_bounds = array<i64: 128, 128>}, {pipeline_mode = #tpu.pipeline_mode<synchronous>, transform_indices = @transform_9, window_bounds = array<i64: 1, 128>}, {pipeline_mode = #tpu.pipeline_mode<synchronous>, transform_indices = @transform_10, window_bounds = array<i64: 1, 128>}, {pipeline_mode = #tpu.pipeline_mode<synchronous>, transform_indices = @transform_11, window_bounds = array<i64: 128, 128>}, {pipeline_mode = #tpu.pipeline_mode<synchronous>, transform_indices = @transform_12, window_bounds = array<i64: 128, 128>}, {pipeline_mode = #tpu.pipeline_mode<synchronous>, transform_indices = @transform_13, window_bounds = array<i64: 1, 128>}, {pipeline_mode = #tpu.pipeline_mode<synchronous>, transform_indices = @transform_14, window_bounds = array<i64: 1, 128>}, {pipeline_mode = #tpu.pipeline_mode<synchronous>, transform_indices = @transform_15, window_bounds = array<i64: 128, 128>}, {pipeline_mode = #tpu.pipeline_mode<synchronous>, transform_indices = @transform_16, window_bounds = array<i64: 1, 128>}, {pipeline_mode = #tpu.pipeline_mode<synchronous>, transform_indices = @transform_17, window_bounds = array<i64: 128, 128>}, {pipeline_mode = #tpu.pipeline_mode<synchronous>, transform_indices = @transform_18, window_bounds = array<i64: 1, 128>}, {pipeline_mode = #tpu.pipeline_mode<synchronous>, transform_indices = @transform_19, window_bounds = array<i64: 16, 128>}]} {
    %c0 = arith.constant 0 : index
    %c0_0 = arith.constant 0 : index
    %0 = vector.load %arg1[%c0, %c0_0] : memref<128x128xbf16, #tpu.memory_space<vmem>>, vector<128x128xbf16>
    %c0_1 = arith.constant 0 : index
    %c0_2 = arith.constant 0 : index
    %1 = vector.load %arg2[%c0_1, %c0_2] : memref<128x128xbf16, #tpu.memory_space<vmem>>, vector<128x128xbf16>
    %cst = arith.constant dense<0.000000e+00> : vector<128x128xf32>
    %2 = tpu.matmul %0, %1, %cst {dimension_numbers = #tpu.dot_dimension_numbers<[1], [0], [0], [1], [0, 0, 1, 1], [], []>} : vector<128x128xbf16>, vector<128x128xbf16>, vector<128x128xf32> -> vector<128x128xf32>
    %3 = arith.truncf %2 : vector<128x128xf32> to vector<128x128xbf16>
    %c0_3 = arith.constant 0 : index
    %c0_4 = arith.constant 0 : index
    %4 = vector.load %arg4[%c0_3, %c0_4] : memref<128x128xbf16, #tpu.memory_space<vmem>>, vector<128x128xbf16>
    %cst_5 = arith.constant dense<0.000000e+00> : vector<128x128xf32>
    %5 = tpu.matmul %3, %4, %cst_5 {dimension_numbers = #tpu.dot_dimension_numbers<[1], [0], [0], [1], [0, 0, 1, 1], [], []>} : vector<128x128xbf16>, vector<128x128xbf16>, vector<128x128xf32> -> vector<128x128xf32>
    %c0_6 = arith.constant 0 : index
    %c0_7 = arith.constant 0 : index
    %6 = vector.load %arg5[%c0_6, %c0_7] : memref<128x128xbf16, #tpu.memory_space<vmem>>, vector<128x128xbf16>
    %cst_8 = arith.constant dense<0.000000e+00> : vector<128x128xf32>
    %7 = tpu.matmul %1, %6, %cst_8 {dimension_numbers = #tpu.dot_dimension_numbers<[1], [0], [0], [1], [0, 0, 1, 1], [], []>} : vector<128x128xbf16>, vector<128x128xbf16>, vector<128x128xf32> -> vector<128x128xf32>
    %8 = arith.addf %5, %7 : vector<128x128xf32>
    %c0_9 = arith.constant 0 : index
    %c0_10 = arith.constant 0 : index
    %9 = vector.load %arg6[%c0_9, %c0_10] : memref<1x128xf32, #tpu.memory_space<vmem>>, vector<1x128xf32>
    %10 = vector.broadcast %9 : vector<1x128xf32> to vector<128x128xf32>
    %11 = arith.mulf %8, %10 : vector<128x128xf32>
    %c0_11 = arith.constant 0 : index
    %c0_12 = arith.constant 0 : index
    %12 = vector.load %arg7[%c0_11, %c0_12] : memref<1x128xf32, #tpu.memory_space<vmem>>, vector<1x128xf32>
    %13 = vector.broadcast %12 : vector<1x128xf32> to vector<128x128xf32>
    %14 = arith.addf %11, %13 : vector<128x128xf32>
    %cst_13 = arith.constant 0.000000e+00 : f32
    %15 = vector.broadcast %cst_13 : f32 to vector<128x128xf32>
    %16 = arith.maximumf %14, %15 : vector<128x128xf32>
    %17 = arith.truncf %16 : vector<128x128xf32> to vector<128x128xbf16>
    %cst_14 = arith.constant dense<0.000000e+00> : vector<128x128xf32>
    %18 = tpu.matmul %0, %17, %cst_14 {dimension_numbers = #tpu.dot_dimension_numbers<[1], [0], [0], [1], [0, 0, 1, 1], [], []>} : vector<128x128xbf16>, vector<128x128xbf16>, vector<128x128xf32> -> vector<128x128xf32>
    %19 = arith.truncf %18 : vector<128x128xf32> to vector<128x128xbf16>
    %c0_15 = arith.constant 0 : index
    %c0_16 = arith.constant 0 : index
    %20 = vector.load %arg8[%c0_15, %c0_16] : memref<128x128xbf16, #tpu.memory_space<vmem>>, vector<128x128xbf16>
    %cst_17 = arith.constant dense<0.000000e+00> : vector<128x128xf32>
    %21 = tpu.matmul %19, %20, %cst_17 {dimension_numbers = #tpu.dot_dimension_numbers<[1], [0], [0], [1], [0, 0, 1, 1], [], []>} : vector<128x128xbf16>, vector<128x128xbf16>, vector<128x128xf32> -> vector<128x128xf32>
    %c0_18 = arith.constant 0 : index
    %c0_19 = arith.constant 0 : index
    %22 = vector.load %arg9[%c0_18, %c0_19] : memref<128x128xbf16, #tpu.memory_space<vmem>>, vector<128x128xbf16>
    %cst_20 = arith.constant dense<0.000000e+00> : vector<128x128xf32>
    %23 = tpu.matmul %17, %22, %cst_20 {dimension_numbers = #tpu.dot_dimension_numbers<[1], [0], [0], [1], [0, 0, 1, 1], [], []>} : vector<128x128xbf16>, vector<128x128xbf16>, vector<128x128xf32> -> vector<128x128xf32>
    %24 = arith.addf %21, %23 : vector<128x128xf32>
    %c0_21 = arith.constant 0 : index
    %c0_22 = arith.constant 0 : index
    %25 = vector.load %arg10[%c0_21, %c0_22] : memref<1x128xf32, #tpu.memory_space<vmem>>, vector<1x128xf32>
    %26 = vector.broadcast %25 : vector<1x128xf32> to vector<128x128xf32>
    %27 = arith.mulf %24, %26 : vector<128x128xf32>
    %c0_23 = arith.constant 0 : index
    %c0_24 = arith.constant 0 : index
    %28 = vector.load %arg11[%c0_23, %c0_24] : memref<1x128xf32, #tpu.memory_space<vmem>>, vector<1x128xf32>
    %29 = vector.broadcast %28 : vector<1x128xf32> to vector<128x128xf32>
    %30 = arith.addf %27, %29 : vector<128x128xf32>
    %cst_25 = arith.constant 0.000000e+00 : f32
    %31 = vector.broadcast %cst_25 : f32 to vector<128x128xf32>
    %32 = arith.maximumf %30, %31 : vector<128x128xf32>
    %33 = arith.truncf %32 : vector<128x128xf32> to vector<128x128xbf16>
    %cst_26 = arith.constant dense<0.000000e+00> : vector<128x128xf32>
    %34 = tpu.matmul %0, %33, %cst_26 {dimension_numbers = #tpu.dot_dimension_numbers<[1], [0], [0], [1], [0, 0, 1, 1], [], []>} : vector<128x128xbf16>, vector<128x128xbf16>, vector<128x128xf32> -> vector<128x128xf32>
    %35 = arith.truncf %34 : vector<128x128xf32> to vector<128x128xbf16>
    %c0_27 = arith.constant 0 : index
    %c0_28 = arith.constant 0 : index
    %36 = vector.load %arg12[%c0_27, %c0_28] : memref<128x128xbf16, #tpu.memory_space<vmem>>, vector<128x128xbf16>
    %cst_29 = arith.constant dense<0.000000e+00> : vector<128x128xf32>
    %37 = tpu.matmul %35, %36, %cst_29 {dimension_numbers = #tpu.dot_dimension_numbers<[1], [0], [0], [1], [0, 0, 1, 1], [], []>} : vector<128x128xbf16>, vector<128x128xbf16>, vector<128x128xf32> -> vector<128x128xf32>
    %c0_30 = arith.constant 0 : index
    %c0_31 = arith.constant 0 : index
    %38 = vector.load %arg13[%c0_30, %c0_31] : memref<128x128xbf16, #tpu.memory_space<vmem>>, vector<128x128xbf16>
    %cst_32 = arith.constant dense<0.000000e+00> : vector<128x128xf32>
    %39 = tpu.matmul %33, %38, %cst_32 {dimension_numbers = #tpu.dot_dimension_numbers<[1], [0], [0], [1], [0, 0, 1, 1], [], []>} : vector<128x128xbf16>, vector<128x128xbf16>, vector<128x128xf32> -> vector<128x128xf32>
    %40 = arith.addf %37, %39 : vector<128x128xf32>
    %c0_33 = arith.constant 0 : index
    %c0_34 = arith.constant 0 : index
    %41 = vector.load %arg14[%c0_33, %c0_34] : memref<1x128xf32, #tpu.memory_space<vmem>>, vector<1x128xf32>
    %42 = vector.broadcast %41 : vector<1x128xf32> to vector<128x128xf32>
    %43 = arith.mulf %40, %42 : vector<128x128xf32>
    %c0_35 = arith.constant 0 : index
    %c0_36 = arith.constant 0 : index
    %44 = vector.load %arg15[%c0_35, %c0_36] : memref<1x128xf32, #tpu.memory_space<vmem>>, vector<1x128xf32>
    %45 = vector.broadcast %44 : vector<1x128xf32> to vector<128x128xf32>
    %46 = arith.addf %43, %45 : vector<128x128xf32>
    %cst_37 = arith.constant 0.000000e+00 : f32
    %47 = vector.broadcast %cst_37 : f32 to vector<128x128xf32>
    %48 = arith.maximumf %46, %47 : vector<128x128xf32>
    %49 = arith.truncf %48 : vector<128x128xf32> to vector<128x128xbf16>
    %c0_38 = arith.constant 0 : index
    %c0_39 = arith.constant 0 : index
    %50 = vector.load %arg3[%c0_38, %c0_39] : memref<16x128xbf16, #tpu.memory_space<vmem>>, vector<16x128xbf16>
    %cst_40 = arith.constant dense<0.000000e+00> : vector<16x128xf32>
    %51 = tpu.matmul %50, %49, %cst_40 {dimension_numbers = #tpu.dot_dimension_numbers<[1], [0], [0], [1], [0, 0, 1, 1], [], []>} : vector<16x128xbf16>, vector<128x128xbf16>, vector<16x128xf32> -> vector<16x128xf32>
    %52 = arith.truncf %51 : vector<16x128xf32> to vector<16x128xbf16>
    %c0_41 = arith.constant 0 : index
    %c0_42 = arith.constant 0 : index
    %53 = vector.load %arg16[%c0_41, %c0_42] : memref<128x128xbf16, #tpu.memory_space<vmem>>, vector<128x128xbf16>
    %cst_43 = arith.constant dense<0.000000e+00> : vector<16x128xf32>
    %54 = tpu.matmul %52, %53, %cst_43 {dimension_numbers = #tpu.dot_dimension_numbers<[1], [0], [0], [1], [0, 0, 1, 1], [], []>} : vector<16x128xbf16>, vector<128x128xbf16>, vector<16x128xf32> -> vector<16x128xf32>
    %c0_44 = arith.constant 0 : index
    %c0_45 = arith.constant 0 : index
    %55 = vector.load %arg17[%c0_44, %c0_45] : memref<1x128xf32, #tpu.memory_space<vmem>>, vector<1x128xf32>
    %56 = vector.broadcast %55 : vector<1x128xf32> to vector<16x128xf32>
    %57 = arith.addf %54, %56 : vector<16x128xf32>
    %cst_46 = arith.constant 0.000000e+00 : f32
    %58 = vector.broadcast %cst_46 : f32 to vector<16x128xf32>
    %59 = arith.maximumf %57, %58 : vector<16x128xf32>
    %60 = arith.truncf %59 : vector<16x128xf32> to vector<16x128xbf16>
    %c0_47 = arith.constant 0 : index
    %c0_48 = arith.constant 0 : index
    %61 = vector.load %arg18[%c0_47, %c0_48] : memref<128x128xbf16, #tpu.memory_space<vmem>>, vector<128x128xbf16>
    %cst_49 = arith.constant dense<0.000000e+00> : vector<16x128xf32>
    %62 = tpu.matmul %60, %61, %cst_49 {dimension_numbers = #tpu.dot_dimension_numbers<[1], [0], [0], [1], [0, 0, 1, 1], [], []>} : vector<16x128xbf16>, vector<128x128xbf16>, vector<16x128xf32> -> vector<16x128xf32>
    %c0_50 = arith.constant 0 : index
    %c0_51 = arith.constant 0 : index
    %63 = vector.load %arg19[%c0_50, %c0_51] : memref<1x128xf32, #tpu.memory_space<vmem>>, vector<1x128xf32>
    %64 = vector.broadcast %63 : vector<1x128xf32> to vector<16x128xf32>
    %65 = arith.addf %62, %64 : vector<16x128xf32>
    %cst_52 = arith.constant dense<0xFF800000> : vector<16xf32>
    %66 = vector.multi_reduction <maximumf>, %65, %cst_52 [1] : vector<16x128xf32> to vector<16xf32>
    %67 = vector.shape_cast %66 : vector<16xf32> to vector<16x1xf32>
    %68 = vector.broadcast %67 : vector<16x1xf32> to vector<16x128xf32>
    %69 = arith.subf %65, %68 : vector<16x128xf32>
    %70 = math.exp %69 : vector<16x128xf32>
    %cst_53 = arith.constant dense<0.000000e+00> : vector<16xf32>
    %71 = vector.multi_reduction <add>, %70, %cst_53 [1] : vector<16x128xf32> to vector<16xf32>
    %72 = vector.shape_cast %71 : vector<16xf32> to vector<16x1xf32>
    %73 = math.log %72 : vector<16x1xf32>
    %74 = vector.broadcast %73 : vector<16x1xf32> to vector<16x128xf32>
    %75 = arith.subf %69, %74 : vector<16x128xf32>
    %c0_54 = arith.constant 0 : index
    %c0_55 = arith.constant 0 : index
    %76 = vector.load %arg20[%c0_54, %c0_55] : memref<16x128xf32, #tpu.memory_space<vmem>>, vector<16x128xf32>
    tpu.vector_store %arg20[%c0_54, %c0_55], %75 {strides = array<i32>} : memref<16x128xf32, #tpu.memory_space<vmem>>, vector<16x128xf32>,
    return
  }
  func.func @transform_0(%arg0: i32) -> (i32, i32) {
    %c0_i32 = arith.constant 0 : i32
    %c0_i32_0 = arith.constant 0 : i32
    %c0_i32_1 = arith.constant 0 : i32
    return %c0_i32, %c0_i32_0 : i32, i32
  }
  func.func @transform_1(%arg0: i32) -> (i32, i32) {
    %c0_i32 = arith.constant 0 : i32
    %c0_i32_0 = arith.constant 0 : i32
    %c0_i32_1 = arith.constant 0 : i32
    return %c0_i32, %c0_i32_0 : i32, i32
  }
  func.func @transform_2(%arg0: i32) -> (i32, i32) {
    %c0_i32 = arith.constant 0 : i32
    %c0_i32_0 = arith.constant 0 : i32
    %c0_i32_1 = arith.constant 0 : i32
    return %c0_i32, %c0_i32_0 : i32, i32
  }
  func.func @transform_3(%arg0: i32) -> (i32, i32) {
    %c0_i32 = arith.constant 0 : i32
    %c0_i32_0 = arith.constant 0 : i32
    %c0_i32_1 = arith.constant 0 : i32
    return %c0_i32, %c0_i32_0 : i32, i32
  }
  func.func @transform_4(%arg0: i32) -> (i32, i32) {
    %c0_i32 = arith.constant 0 : i32
    %c0_i32_0 = arith.constant 0 : i32
    %c0_i32_1 = arith.constant 0 : i32
    return %c0_i32, %c0_i32_0 : i32, i32
  }
  func.func @transform_5(%arg0: i32) -> (i32, i32) {
    %c0_i32 = arith.constant 0 : i32
    %c0_i32_0 = arith.constant 0 : i32
    %c0_i32_1 = arith.constant 0 : i32
    return %c0_i32, %c0_i32_0 : i32, i32
  }
  func.func @transform_6(%arg0: i32) -> (i32, i32) {
    %c0_i32 = arith.constant 0 : i32
    %c0_i32_0 = arith.constant 0 : i32
    %c0_i32_1 = arith.constant 0 : i32
    return %c0_i32, %c0_i32_0 : i32, i32
  }
  func.func @transform_7(%arg0: i32) -> (i32, i32) {
    %c0_i32 = arith.constant 0 : i32
    %c0_i32_0 = arith.constant 0 : i32
    %c0_i32_1 = arith.constant 0 : i32
    return %c0_i32, %c0_i32_0 : i32, i32
  }
  func.func @transform_8(%arg0: i32) -> (i32, i32) {
    %c0_i32 = arith.constant 0 : i32
    %c0_i32_0 = arith.constant 0 : i32
    %c0_i32_1 = arith.constant 0 : i32
    return %c0_i32, %c0_i32_0 : i32, i32
  }
  func.func @transform_9(%arg0: i32) -> (i32, i32) {
    %c0_i32 = arith.constant 0 : i32
    %c0_i32_0 = arith.constant 0 : i32
    %c0_i32_1 = arith.constant 0 : i32
    return %c0_i32, %c0_i32_0 : i32, i32
  }
  func.func @transform_10(%arg0: i32) -> (i32, i32) {
    %c0_i32 = arith.constant 0 : i32
    %c0_i32_0 = arith.constant 0 : i32
    %c0_i32_1 = arith.constant 0 : i32
    return %c0_i32, %c0_i32_0 : i32, i32
  }
  func.func @transform_11(%arg0: i32) -> (i32, i32) {
    %c0_i32 = arith.constant 0 : i32
    %c0_i32_0 = arith.constant 0 : i32
    %c0_i32_1 = arith.constant 0 : i32
    return %c0_i32, %c0_i32_0 : i32, i32
  }
  func.func @transform_12(%arg0: i32) -> (i32, i32) {
    %c0_i32 = arith.constant 0 : i32
    %c0_i32_0 = arith.constant 0 : i32
    %c0_i32_1 = arith.constant 0 : i32
    return %c0_i32, %c0_i32_0 : i32, i32
  }
  func.func @transform_13(%arg0: i32) -> (i32, i32) {
    %c0_i32 = arith.constant 0 : i32
    %c0_i32_0 = arith.constant 0 : i32
    %c0_i32_1 = arith.constant 0 : i32
    return %c0_i32, %c0_i32_0 : i32, i32
  }
  func.func @transform_14(%arg0: i32) -> (i32, i32) {
    %c0_i32 = arith.constant 0 : i32
    %c0_i32_0 = arith.constant 0 : i32
    %c0_i32_1 = arith.constant 0 : i32
    return %c0_i32, %c0_i32_0 : i32, i32
  }
  func.func @transform_15(%arg0: i32) -> (i32, i32) {
    %c0_i32 = arith.constant 0 : i32
    %c0_i32_0 = arith.constant 0 : i32
    %c0_i32_1 = arith.constant 0 : i32
    return %c0_i32, %c0_i32_0 : i32, i32
  }
  func.func @transform_16(%arg0: i32) -> (i32, i32) {
    %c0_i32 = arith.constant 0 : i32
    %c0_i32_0 = arith.constant 0 : i32
    %c0_i32_1 = arith.constant 0 : i32
    return %c0_i32, %c0_i32_0 : i32, i32
  }
  func.func @transform_17(%arg0: i32) -> (i32, i32) {
    %c0_i32 = arith.constant 0 : i32
    %c0_i32_0 = arith.constant 0 : i32
    %c0_i32_1 = arith.constant 0 : i32
    return %c0_i32, %c0_i32_0 : i32, i32
  }
  func.func @transform_18(%arg0: i32) -> (i32, i32) {
    %c0_i32 = arith.constant 0 : i32
    %c0_i32_0 = arith.constant 0 : i32
    %c0_i32_1 = arith.constant 0 : i32
    return %c0_i32, %c0_i32_0 : i32, i32
  }
  func.func @transform_19(%arg0: i32) -> (i32, i32) {
    %c0_i32 = arith.constant 0 : i32
    %c0_i32_0 = arith.constant 0 : i32
    %c0_i32_1 = arith.constant 0 : i32
    return %c0_i32, %c0_i32_0 : i32, i32
  }
}

</mosaic_0001>

<llo_original>
// kernel: tpu_custom_call.1
$region0: #{tpu_custom_call.1}
  #allocation0 [shape = 'u32[]', space=smem, size = 0x4, offset = 0x4, fixed_abs, tag = 'smem constant byte address 0x4 - core index']
  #allocation1 [shape = 'u32[144,128]{1,0:T(1,128)}', space=vmem, size = 0x12000, scoped, tag = 'internal scratch']
  %s0 = inlined_call_operand.hbm [shape: bf16[128,128], index: 0, kind: input, shape index: {}]
  %s1 = inlined_call_operand.hbm [shape: bf16[128,128], index: 1, kind: input, shape index: {}]
  %s2 = inlined_call_operand.hbm [shape: bf16[16,128], index: 2, kind: input, shape index: {}]
  %s3 = inlined_call_operand.hbm [shape: bf16[128,128], index: 3, kind: input, shape index: {}]
  %s4 = inlined_call_operand.hbm [shape: bf16[128,128], index: 4, kind: input, shape index: {}]
  %s5 = inlined_call_operand.vmem [shape: f32[1,128], index: 5, kind: input, shape index: {}]
  %s6 = inlined_call_operand.vmem [shape: f32[1,128], index: 6, kind: input, shape index: {}]
  %s7 = inlined_call_operand.hbm [shape: bf16[128,128], index: 7, kind: input, shape index: {}]
  %s8 = inlined_call_operand.hbm [shape: bf16[128,128], index: 8, kind: input, shape index: {}]
  %s9 = inlined_call_operand.vmem [shape: f32[1,128], index: 9, kind: input, shape index: {}]
  %s10 = inlined_call_operand.vmem [shape: f32[1,128], index: 10, kind: input, shape index: {}]
  %s11 = inlined_call_operand.hbm [shape: bf16[128,128], index: 11, kind: input, shape index: {}]
  %s12 = inlined_call_operand.hbm [shape: bf16[128,128], index: 12, kind: input, shape index: {}]
  %s13 = inlined_call_operand.vmem [shape: f32[1,128], index: 13, kind: input, shape index: {}]
  %s14 = inlined_call_operand.vmem [shape: f32[1,128], index: 14, kind: input, shape index: {}]
  %s15 = inlined_call_operand.hbm [shape: bf16[128,128], index: 15, kind: input, shape index: {}]
  %s16 = inlined_call_operand.vmem [shape: f32[1,128], index: 16, kind: input, shape index: {}]
  %s17 = inlined_call_operand.hbm [shape: bf16[128,128], index: 17, kind: input, shape index: {}]
  %s18 = inlined_call_operand.vmem [shape: f32[1,128], index: 18, kind: input, shape index: {}]
  %s19 = inlined_call_operand.hbm [shape: f32[16,128], index: 19, kind: output, shape index: {}]
  %s20 = sld [smem:[#allocation0]]
  $region130: #{tpu_custom_call.1} parent=0
    _
  %s22 = ssub.s32 1, %s20
  %s23 = scalar_select 0, %s22, %s20
  $region1: #{tpu_custom_call.1} parent=0
    #allocation2 [shape = 'u8[32768]{0}', space=vmem, size = 0x8000, scoped, tag = 'input window, operand 0, single buffered']
    #allocation3 [shape = 's32[1]{0}', space=sflag, size = 0x4, scoped, tag = 'scoped memory for tpu_custom_call.1']
    #allocation4 [shape = 's32[1]{0}', space=sflag, size = 0x4, scoped, tag = 'scoped memory for tpu_custom_call.1']
    #allocation5 [shape = 'u8[32768]{0}', space=vmem, size = 0x8000, scoped, tag = 'input window, operand 1, single buffered']
    #allocation6 [shape = 's32[1]{0}', space=sflag, size = 0x4, scoped, tag = 'scoped memory for tpu_custom_call.1']
    #allocation7 [shape = 'u8[4096]{0}', space=vmem, size = 0x1000, scoped, tag = 'input window, operand 2, single buffered']
    #allocation8 [shape = 'u8[32768]{0}', space=vmem, size = 0x8000, scoped, tag = 'input window, operand 3, single buffered']
    #allocation9 [shape = 's32[1]{0}', space=sflag, size = 0x4, scoped, tag = 'scoped memory for tpu_custom_call.1']
    #allocation10 [shape = 'u8[32768]{0}', space=vmem, size = 0x8000, scoped, tag = 'input window, operand 4, single buffered']
    #allocation11 [shape = 'u8[32768]{0}', space=vmem, size = 0x8000, scoped, tag = 'input window, operand 7, single buffered']
    #allocation12 [shape = 's32[1]{0}', space=sflag, size = 0x4, scoped, tag = 'scoped memory for tpu_custom_call.1']
    #allocation13 [shape = 'u8[32768]{0}', space=vmem, size = 0x8000, scoped, tag = 'input window, operand 8, single buffered']
    #allocation14 [shape = 'u8[32768]{0}', space=vmem, size = 0x8000, scoped, tag = 'input window, operand 11, single buffered']
    #allocation15 [shape = 's32[1]{0}', space=sflag, size = 0x4, scoped, tag = 'scoped memory for tpu_custom_call.1']
    #allocation16 [shape = 'u8[32768]{0}', space=vmem, size = 0x8000, scoped, tag = 'input window, operand 12, single buffered']
    #allocation17 [shape = 'u8[32768]{0}', space=vmem, size = 0x8000, scoped, tag = 'input window, operand 15, single buffered']
    #allocation18 [shape = 's32[1]{0}', space=sflag, size = 0x4, scoped, tag = 'scoped memory for tpu_custom_call.1']
    #allocation19 [shape = 'u8[32768]{0}', space=vmem, size = 0x8000, scoped, tag = 'input window, operand 17, single buffered']
    #allocation20 [shape = 'u8[8192]{0}', space=vmem, size = 0x2000, scoped, tag = 'output window, operand 0, single buffered']
    %24 = vsyncpa [#allocation3], 0
    %25 = vsyncpa [#allocation6], 0
    %26 = vsyncpa [#allocation9], 0
    %27 = vsyncpa [#allocation12], 0
    %28 = vsyncpa [#allocation15], 0
    %29 = vsyncpa [#allocation18], 0
    %30 = vsyncpa [#allocation4], 0
    // Predicated region
    $region2: #{tpu_custom_call.1} parent=1 // pred_check
      _
    $region3: #{tpu_custom_call.1} parent=1 // pred_check_branch
      %32 = sbr.rel (0) target = $region5
    $region4: #{tpu_custom_call.1} parent=1 // pred_region
      %s34 = ssub.s32 1024, 1024
      %35 = vsyncadd [#allocation3], %s34
      %s36 = sshll.u32 [#allocation2], 4
      %s37 = int_to_ptr.vmem [resolvable:$true] %s36
      %42 = dma.hbm_to_vmem [thread:$0]  %s0, 1024, %s37, [#allocation3], 64, 64, 4
    $region5: #{tpu_custom_call.1} parent=1 // pred_fallthru
      _
    // Predicated region
    $region6: #{tpu_custom_call.1} parent=1 // pred_check
      _
    $region7: #{tpu_custom_call.1} parent=1 // pred_check_branch
      %44 = sbr.rel (0) target = $region9
    $region8: #{tpu_custom_call.1} parent=1 // pred_region
      %s46 = ssub.s32 1024, 1024
      %47 = vsyncadd [#allocation6], %s46
      %s48 = sshll.u32 [#allocation5], 4
      %s49 = int_to_ptr.vmem [resolvable:$true] %s48
      %54 = dma.hbm_to_vmem [thread:$0]  %s1, 1024, %s49, [#allocation6], 64, 64, 4
    $region9: #{tpu_custom_call.1} parent=1 // pred_fallthru
      _
    // Predicated region
    $region10: #{tpu_custom_call.1} parent=1 // pred_check
      _
    $region11: #{tpu_custom_call.1} parent=1 // pred_check_branch
      %56 = sbr.rel (0) target = $region13
    $region12: #{tpu_custom_call.1} parent=1 // pred_region
      %s58 = ssub.s32 128, 128
      %59 = vsyncadd [#allocation6], %s58
      %s60 = sshll.u32 [#allocation7], 4
      %s61 = int_to_ptr.vmem [resolvable:$true] %s60
      %66 = dma.hbm_to_vmem [thread:$0]  %s2, 128, %s61, [#allocation6], 64, 64, 4
    $region13: #{tpu_custom_call.1} parent=1 // pred_fallthru
      _
    // Predicated region
    $region14: #{tpu_custom_call.1} parent=1 // pred_check
      _
    $region15: #{tpu_custom_call.1} parent=1 // pred_check_branch
      %68 = sbr.rel (0) target = $region17
    $region16: #{tpu_custom_call.1} parent=1 // pred_region
      %s70 = ssub.s32 1024, 1024
      %71 = vsyncadd [#allocation9], %s70
      %s72 = sshll.u32 [#allocation8], 4
      %s73 = int_to_ptr.vmem [resolvable:$true] %s72
      %78 = dma.hbm_to_vmem [thread:$0]  %s3, 1024, %s73, [#allocation9], 64, 64, 4
    $region17: #{tpu_custom_call.1} parent=1 // pred_fallthru
      _
    // Predicated region
    $region18: #{tpu_custom_call.1} parent=1 // pred_check
      _
    $region19: #{tpu_custom_call.1} parent=1 // pred_check_branch
      %80 = sbr.rel (0) target = $region21
    $region20: #{tpu_custom_call.1} parent=1 // pred_region
      %s82 = ssub.s32 1024, 1024
      %83 = vsyncadd [#allocation9], %s82
      %s84 = sshll.u32 [#allocation10], 4
      %s85 = int_to_ptr.vmem [resolvable:$true] %s84
      %90 = dma.hbm_to_vmem [thread:$0]  %s4, 1024, %s85, [#allocation9], 64, 64, 4
    $region21: #{tpu_custom_call.1} parent=1 // pred_fallthru
      _
    // Predicated region
    $region22: #{tpu_custom_call.1} parent=1 // pred_check
      _
    $region23: #{tpu_custom_call.1} parent=1 // pred_check_branch
      %92 = sbr.rel (0) target = $region25
    $region24: #{tpu_custom_call.1} parent=1 // pred_region
      _
    $region25: #{tpu_custom_call.1} parent=1 // pred_fallthru
      _
    // Predicated region
    $region26: #{tpu_custom_call.1} parent=1 // pred_check
      _
    $region27: #{tpu_custom_call.1} parent=1 // pred_check_branch
      %94 = sbr.rel (0) target = $region29
    $region28: #{tpu_custom_call.1} parent=1 // pred_region
      _
    $region29: #{tpu_custom_call.1} parent=1 // pred_fallthru
      _
    // Predicated region
    $region30: #{tpu_custom_call.1} parent=1 // pred_check
      _
    $region31: #{tpu_custom_call.1} parent=1 // pred_check_branch
      %96 = sbr.rel (0) target = $region33
    $region32: #{tpu_custom_call.1} parent=1 // pred_region
      %s98 = ssub.s32 1024, 1024
      %99 = vsyncadd [#allocation12], %s98
      %s100 = sshll.u32 [#allocation11], 4
      %s101 = int_to_ptr.vmem [resolvable:$true] %s100
      %106 = dma.hbm_to_vmem [thread:$0]  %s7, 1024, %s101, [#allocation12], 64, 64, 4
    $region33: #{tpu_custom_call.1} parent=1 // pred_fallthru
      _
    // Predicated region
    $region34: #{tpu_custom_call.1} parent=1 // pred_check
      _
    $region35: #{tpu_custom_call.1} parent=1 // pred_check_branch
      %108 = sbr.rel (0) target = $region37
    $region36: #{tpu_custom_call.1} parent=1 // pred_region
      %s110 = ssub.s32 1024, 1024
      %111 = vsyncadd [#allocation12], %s110
      %s112 = sshll.u32 [#allocation13], 4
      %s113 = int_to_ptr.vmem [resolvable:$true] %s112
      %118 = dma.hbm_to_vmem [thread:$0]  %s8, 1024, %s113, [#allocation12], 64, 64, 4
    $region37: #{tpu_custom_call.1} parent=1 // pred_fallthru
      _
    // Predicated region
    $region38: #{tpu_custom_call.1} parent=1 // pred_check
      _
    $region39: #{tpu_custom_call.1} parent=1 // pred_check_branch
      %120 = sbr.rel (0) target = $region41
    $region40: #{tpu_custom_call.1} parent=1 // pred_region
      _
    $region41: #{tpu_custom_call.1} parent=1 // pred_fallthru
      _
    // Predicated region
    $region42: #{tpu_custom_call.1} parent=1 // pred_check
      _
    $region43: #{tpu_custom_call.1} parent=1 // pred_check_branch
      %122 = sbr.rel (0) target = $region45
    $region44: #{tpu_custom_call.1} parent=1 // pred_region
      _
    $region45: #{tpu_custom_call.1} parent=1 // pred_fallthru
      _
    // Predicated region
    $region46: #{tpu_custom_call.1} parent=1 // pred_check
      _
    $region47: #{tpu_custom_call.1} parent=1 // pred_check_branch
      %124 = sbr.rel (0) target = $region49
    $region48: #{tpu_custom_call.1} parent=1 // pred_region
      %s126 = ssub.s32 1024, 1024
      %127 = vsyncadd [#allocation15], %s126
      %s128 = sshll.u32 [#allocation14], 4
      %s129 = int_to_ptr.vmem [resolvable:$true] %s128
      %134 = dma.hbm_to_vmem [thread:$0]  %s11, 1024, %s129, [#allocation15], 64, 64, 4
    $region49: #{tpu_custom_call.1} parent=1 // pred_fallthru
      _
    // Predicated region
    $region50: #{tpu_custom_call.1} parent=1 // pred_check
      _
    $region51: #{tpu_custom_call.1} parent=1 // pred_check_branch
      %136 = sbr.rel (0) target = $region53
    $region52: #{tpu_custom_call.1} parent=1 // pred_region
      %s138 = ssub.s32 1024, 1024
      %139 = vsyncadd [#allocation15], %s138
      %s140 = sshll.u32 [#allocation16], 4
      %s141 = int_to_ptr.vmem [resolvable:$true] %s140
      %146 = dma.hbm_to_vmem [thread:$0]  %s12, 1024, %s141, [#allocation15], 64, 64, 4
    $region53: #{tpu_custom_call.1} parent=1 // pred_fallthru
      _
    // Predicated region
    $region54: #{tpu_custom_call.1} parent=1 // pred_check
      _
    $region55: #{tpu_custom_call.1} parent=1 // pred_check_branch
      %148 = sbr.rel (0) target = $region57
    $region56: #{tpu_custom_call.1} parent=1 // pred_region
      _
    $region57: #{tpu_custom_call.1} parent=1 // pred_fallthru
      _
    // Predicated region
    $region58: #{tpu_custom_call.1} parent=1 // pred_check
      _
    $region59: #{tpu_custom_call.1} parent=1 // pred_check_branch
      %150 = sbr.rel (0) target = $region61
    $region60: #{tpu_custom_call.1} parent=1 // pred_region
      _
    $region61: #{tpu_custom_call.1} parent=1 // pred_fallthru
      _
    // Predicated region
    $region62: #{tpu_custom_call.1} parent=1 // pred_check
      _
    $region63: #{tpu_custom_call.1} parent=1 // pred_check_branch
      %152 = sbr.rel (0) target = $region65
    $region64: #{tpu_custom_call.1} parent=1 // pred_region
      %s154 = ssub.s32 1024, 1024
      %155 = vsyncadd [#allocation18], %s154
      %s156 = sshll.u32 [#allocation17], 4
      %s157 = int_to_ptr.vmem [resolvable:$true] %s156
      %162 = dma.hbm_to_vmem [thread:$0]  %s15, 1024, %s157, [#allocation18], 64, 64, 4
    $region65: #{tpu_custom_call.1} parent=1 // pred_fallthru
      _
    // Predicated region
    $region66: #{tpu_custom_call.1} parent=1 // pred_check
      _
    $region67: #{tpu_custom_call.1} parent=1 // pred_check_branch
      %164 = sbr.rel (0) target = $region69
    $region68: #{tpu_custom_call.1} parent=1 // pred_region
      _
    $region69: #{tpu_custom_call.1} parent=1 // pred_fallthru
      _
    // Predicated region
    $region70: #{tpu_custom_call.1} parent=1 // pred_check
      _
    $region71: #{tpu_custom_call.1} parent=1 // pred_check_branch
      %166 = sbr.rel (0) target = $region73
    $region72: #{tpu_custom_call.1} parent=1 // pred_region
      %s168 = ssub.s32 1024, 1024
      %169 = vsyncadd [#allocation18], %s168
      %s170 = sshll.u32 [#allocation19], 4
      %s171 = int_to_ptr.vmem [resolvable:$true] %s170
      %176 = dma.hbm_to_vmem [thread:$0]  %s17, 1024, %s171, [#allocation18], 64, 64, 4
    $region73: #{tpu_custom_call.1} parent=1 // pred_fallthru
      _
    // Predicated region
    $region74: #{tpu_custom_call.1} parent=1 // pred_check
      _
    $region75: #{tpu_custom_call.1} parent=1 // pred_check_branch
      %178 = sbr.rel (0) target = $region77
    $region76: #{tpu_custom_call.1} parent=1 // pred_region
      _
    $region77: #{tpu_custom_call.1} parent=1 // pred_fallthru
      _
    // Predicated region
    $region78: #{tpu_custom_call.1} parent=1 // pred_check
      _
    $region79: #{tpu_custom_call.1} parent=1 // pred_check_branch
      %180 = sbr.rel (0) target = $region81
    $region80: #{tpu_custom_call.1} parent=1 // pred_region
      %181 = dma.done [#allocation3], 1024
    $region81: #{tpu_custom_call.1} parent=1 // pred_fallthru
      _
    // Predicated region
    $region82: #{tpu_custom_call.1} parent=1 // pred_check
      _
    $region83: #{tpu_custom_call.1} parent=1 // pred_check_branch
      %183 = sbr.rel (0) target = $region85
    $region84: #{tpu_custom_call.1} parent=1 // pred_region
      %184 = dma.done [#allocation6], 1024
    $region85: #{tpu_custom_call.1} parent=1 // pred_fallthru
      _
    // Predicated region
    $region86: #{tpu_custom_call.1} parent=1 // pred_check
      _
    $region87: #{tpu_custom_call.1} parent=1 // pred_check_branch
      %186 = sbr.rel (0) target = $region89
    $region88: #{tpu_custom_call.1} parent=1 // pred_region
      %187 = dma.done [#allocation6], 128
    $region89: #{tpu_custom_call.1} parent=1 // pred_fallthru
      _
    // Predicated region
    $region90: #{tpu_custom_call.1} parent=1 // pred_check
      _
    $region91: #{tpu_custom_call.1} parent=1 // pred_check_branch
      %189 = sbr.rel (0) target = $region93
    $region92: #{tpu_custom_call.1} parent=1 // pred_region
      %190 = dma.done [#allocation9], 1024
    $region93: #{tpu_custom_call.1} parent=1 // pred_fallthru
      _
    // Predicated region
    $region94: #{tpu_custom_call.1} parent=1 // pred_check
      _
    $region95: #{tpu_custom_call.1} parent=1 // pred_check_branch
      %192 = sbr.rel (0) target = $region97
    $region96: #{tpu_custom_call.1} parent=1 // pred_region
      %193 = dma.done [#allocation9], 1024
    $region97: #{tpu_custom_call.1} parent=1 // pred_fallthru
      _
    // Predicated region
    $region98: #{tpu_custom_call.1} parent=1 // pred_check
      _
    $region99: #{tpu_custom_call.1} parent=1 // pred_check_branch
      %195 = sbr.rel (0) target = $region101
    $region100: #{tpu_custom_call.1} parent=1 // pred_region
      %196 = dma.done [#allocation12], 1024
    $region101: #{tpu_custom_call.1} parent=1 // pred_fallthru
      _
    // Predicated region
    $region102: #{tpu_custom_call.1} parent=1 // pred_check
      _
    $region103: #{tpu_custom_call.1} parent=1 // pred_check_branch
      %198 = sbr.rel (0) target = $region105
    $region104: #{tpu_custom_call.1} parent=1 // pred_region
      %199 = dma.done [#allocation12], 1024
    $region105: #{tpu_custom_call.1} parent=1 // pred_fallthru
      _
    // Predicated region
    $region106: #{tpu_custom_call.1} parent=1 // pred_check
      _
    $region107: #{tpu_custom_call.1} parent=1 // pred_check_branch
      %201 = sbr.rel (0) target = $region109
    $region108: #{tpu_custom_call.1} parent=1 // pred_region
      %202 = dma.done [#allocation15], 1024
    $region109: #{tpu_custom_call.1} parent=1 // pred_fallthru
      _
    // Predicated region
    $region110: #{tpu_custom_call.1} parent=1 // pred_check
      _
    $region111: #{tpu_custom_call.1} parent=1 // pred_check_branch
      %204 = sbr.rel (0) target = $region113
    $region112: #{tpu_custom_call.1} parent=1 // pred_region
      %205 = dma.done [#allocation15], 1024
    $region113: #{tpu_custom_call.1} parent=1 // pred_fallthru
      _
    // Predicated region
    $region114: #{tpu_custom_call.1} parent=1 // pred_check
      _
    $region115: #{tpu_custom_call.1} parent=1 // pred_check_branch
      %207 = sbr.rel (0) target = $region117
    $region116: #{tpu_custom_call.1} parent=1 // pred_region
      %208 = dma.done [#allocation18], 1024
    $region117: #{tpu_custom_call.1} parent=1 // pred_fallthru
      _
    // Predicated region
    $region118: #{tpu_custom_call.1} parent=1 // pred_check
      _
    $region119: #{tpu_custom_call.1} parent=1 // pred_check_branch
      %210 = sbr.rel (0) target = $region121
    $region120: #{tpu_custom_call.1} parent=1 // pred_region
      %211 = dma.done [#allocation18], 1024
    $region121: #{tpu_custom_call.1} parent=1 // pred_fallthru
      _
    %v213 = vld [vmem:[#allocation2] sm:$0xf]
    %v214 = vld [vmem:[#allocation2 + $0x4] sm:$0xf]
    %v215 = vld [vmem:[#allocation2 + $0x8] sm:$0xf]
    %v216 = vld [vmem:[#allocation2 + $0xc] sm:$0xf]
    %v217 = vld [vmem:[#allocation2 + $0x10] sm:$0xf]
    %v218 = vld [vmem:[#allocation2 + $0x14] sm:$0xf]
    %v219 = vld [vmem:[#allocation2 + $0x18] sm:$0xf]
    %v220 = vld [vmem:[#allocation2 + $0x1c] sm:$0xf]
    %v221 = vld [vmem:[#allocation2 + $0x20] sm:$0xf]
    %v222 = vld [vmem:[#allocation2 + $0x24] sm:$0xf]
    %v223 = vld [vmem:[#allocation2 + $0x28] sm:$0xf]
    %v224 = vld [vmem:[#allocation2 + $0x2c] sm:$0xf]
    %v225 = vld [vmem:[#allocation2 + $0x30] sm:$0xf]
    %v226 = vld [vmem:[#allocation2 + $0x34] sm:$0xf]
    %v227 = vld [vmem:[#allocation2 + $0x38] sm:$0xf]
    %v228 = vld [vmem:[#allocation2 + $0x3c] sm:$0xf]
    %v229 = vld [vmem:[#allocation5] sm:$0xf]
    %v230 = vld [vmem:[#allocation5 + $0x4] sm:$0xf]
    %v231 = vld [vmem:[#allocation5 + $0x8] sm:$0xf]
    %v232 = vld [vmem:[#allocation5 + $0xc] sm:$0xf]
    %v233 = vld [vmem:[#allocation5 + $0x10] sm:$0xf]
    %v234 = vld [vmem:[#allocation5 + $0x14] sm:$0xf]
    %v235 = vld [vmem:[#allocation5 + $0x18] sm:$0xf]
    %v236 = vld [vmem:[#allocation5 + $0x1c] sm:$0xf]
    %v237 = vld [vmem:[#allocation5 + $0x20] sm:$0xf]
    %v238 = vld [vmem:[#allocation5 + $0x24] sm:$0xf]
    %v239 = vld [vmem:[#allocation5 + $0x28] sm:$0xf]
    %v240 = vld [vmem:[#allocation5 + $0x2c] sm:$0xf]
    %v241 = vld [vmem:[#allocation5 + $0x30] sm:$0xf]
    %v242 = vld [vmem:[#allocation5 + $0x34] sm:$0xf]
    %v243 = vld [vmem:[#allocation5 + $0x38] sm:$0xf]
    %v244 = vld [vmem:[#allocation5 + $0x3c] sm:$0xf]
    %v261 = vunpack.c.l.b16 %v213
    %v262 = vunpack.c.l.b16 %v214
    %v263 = vunpack.c.l.b16 %v215
    %v264 = vunpack.c.l.b16 %v216
    %v265 = vunpack.c.l.b16 %v217
    %v266 = vunpack.c.l.b16 %v218
    %v267 = vunpack.c.l.b16 %v219
    %v268 = vunpack.c.l.b16 %v220
    %v269 = vunpack.c.l.b16 %v221
    %v270 = vunpack.c.l.b16 %v222
    %v271 = vunpack.c.l.b16 %v223
    %v272 = vunpack.c.l.b16 %v224
    %v273 = vunpack.c.l.b16 %v225
    %v274 = vunpack.c.l.b16 %v226
    %v275 = vunpack.c.l.b16 %v227
    %v276 = vunpack.c.l.b16 %v228
    %v277 = vpack.c.b16 %v262, %v261
    %v278 = vpack.c.b16 %v264, %v263
    %v279 = vpack.c.b16 %v266, %v265
    %v280 = vpack.c.b16 %v268, %v267
    %v281 = vpack.c.b16 %v270, %v269
    %v282 = vpack.c.b16 %v272, %v271
    %v283 = vpack.c.b16 %v274, %v273
    %v284 = vpack.c.b16 %v276, %v275
    %v309 = vunpack.c.l.b16 %v229
    %v310 = vunpack.c.l.b16 %v230
    %v311 = vunpack.c.l.b16 %v231
    %v312 = vunpack.c.l.b16 %v232
    %v313 = vunpack.c.l.b16 %v233
    %v314 = vunpack.c.l.b16 %v234
    %v315 = vunpack.c.l.b16 %v235
    %v316 = vunpack.c.l.b16 %v236
    %v317 = vunpack.c.l.b16 %v237
    %v318 = vunpack.c.l.b16 %v238
    %v319 = vunpack.c.l.b16 %v239
    %v320 = vunpack.c.l.b16 %v240
    %v321 = vunpack.c.l.b16 %v241
    %v322 = vunpack.c.l.b16 %v242
    %v323 = vunpack.c.l.b16 %v243
    %v324 = vunpack.c.l.b16 %v244
    %v325 = vpack.c.b16 %v310, %v309
    %v326 = vpack.c.b16 %v312, %v311
    %v327 = vpack.c.b16 %v314, %v313
    %v328 = vpack.c.b16 %v316, %v315
    %v329 = vpack.c.b16 %v318, %v317
    %v330 = vpack.c.b16 %v320, %v319
    %v331 = vpack.c.b16 %v322, %v321
    %v332 = vpack.c.b16 %v324, %v323
    %341 = vmatprep.subr.bf16.mxu0 0
    %342 = vmatpush1.bf16.msra.mxu0 %v332
    %343 = vmatprep.subr.bf16.mxu0 0
    %344 = vmatpush1.bf16.msra.mxu0 %v331
    %345 = vmatprep.subr.bf16.mxu0 0
    %346 = vmatpush1.bf16.msra.mxu0 %v330
    %347 = vmatprep.subr.bf16.mxu0 0
    %348 = vmatpush1.bf16.msra.mxu0 %v329
    %349 = vmatprep.subr.bf16.mxu0 0
    %350 = vmatpush1.bf16.msra.mxu0 %v328
    %351 = vmatprep.subr.bf16.mxu0 0
    %352 = vmatpush1.bf16.msra.mxu0 %v327
    %353 = vmatprep.subr.bf16.mxu0 0
    %354 = vmatpush1.bf16.msra.mxu0 %v326
    %355 = vmatprep.subr.bf16.mxu0 0
    %356 = vmatpush1.bf16.msra.mxu0 %v325
    %357 = vmatprep.subr.bf16.mxu0 0
    %358 = vmatpush2.bf16.msra.mxu0 0
    %359 = vmatprep.subr.bf16.mxu0 0
    %360 = vmatpush2.bf16.msra.mxu0 0
    %361 = vmatprep.subr.bf16.mxu0 0
    %362 = vmatpush2.bf16.msra.mxu0 0
    %363 = vmatprep.subr.bf16.mxu0 0
    %364 = vmatpush2.bf16.msra.mxu0 0
    %365 = vmatprep.subr.bf16.mxu0 0
    %366 = vmatpush2.bf16.msra.mxu0 0
    %367 = vmatprep.subr.bf16.mxu0 0
    %368 = vmatpush2.bf16.msra.mxu0 0
    %369 = vmatprep.subr.bf16.mxu0 0
    %370 = vmatpush2.bf16.msra.mxu0 0
    %371 = vmatprep.subr.bf16.mxu0 0
    %372 = vmatpush2.bf16.msra.mxu0 0
    %373 = vmatprep.mubr.bf16.mxu0 0
    %374 = vmatmul.mubr.bf16.gmra.mxu0 %v277
    %v375 = vpop.f32.mrf.mxu0
    %v376 = vadd.f32 0.0, %v375
    %v377 = vpop.f32.mrf.mxu0
    %v378 = vpop.f32.mrf.mxu0
    %v379 = vadd.f32 0.0, %v378
    %v380 = vpop.f32.mrf.mxu0
    %381 = vmatprep.mubr.bf16.mxu0 0
    %382 = vmatmul.mubr.bf16.gmra.mxu0 %v278
    %v383 = vpop.f32.mrf.mxu0
    %v384 = vadd.f32 0.0, %v383
    %v385 = vpop.f32.mrf.mxu0
    %v386 = vpop.f32.mrf.mxu0
    %v387 = vadd.f32 0.0, %v386
    %v388 = vpop.f32.mrf.mxu0
    %389 = vmatprep.mubr.bf16.mxu0 0
    %390 = vmatmul.mubr.bf16.gmra.mxu0 %v279
    %v391 = vpop.f32.mrf.mxu0
    %v392 = vadd.f32 0.0, %v391
    %v393 = vpop.f32.mrf.mxu0
    %v394 = vpop.f32.mrf.mxu0
    %v395 = vadd.f32 0.0, %v394
    %v396 = vpop.f32.mrf.mxu0
    %397 = vmatprep.mubr.bf16.mxu0 0
    %398 = vmatmul.mubr.bf16.gmra.mxu0 %v280
    %v399 = vpop.f32.mrf.mxu0
    %v400 = vadd.f32 0.0, %v399
    %v401 = vpop.f32.mrf.mxu0
    %v402 = vpop.f32.mrf.mxu0
    %v403 = vadd.f32 0.0, %v402
    %v404 = vpop.f32.mrf.mxu0
    %405 = vmatprep.mubr.bf16.mxu0 0
    %406 = vmatmul.mubr.bf16.gmra.mxu0 %v281
    %v407 = vpop.f32.mrf.mxu0
    %v408 = vadd.f32 0.0, %v407
    %v409 = vpop.f32.mrf.mxu0
    %v410 = vpop.f32.mrf.mxu0
    %v411 = vadd.f32 0.0, %v410
    %v412 = vpop.f32.mrf.mxu0
    %413 = vmatprep.mubr.bf16.mxu0 0
    %414 = vmatmul.mubr.bf16.gmra.mxu0 %v282
    %v415 = vpop.f32.mrf.mxu0
    %v416 = vadd.f32 0.0, %v415
    %v417 = vpop.f32.mrf.mxu0
    %v418 = vpop.f32.mrf.mxu0
    %v419 = vadd.f32 0.0, %v418
    %v420 = vpop.f32.mrf.mxu0
    %421 = vmatprep.mubr.bf16.mxu0 0
    %422 = vmatmul.mubr.bf16.gmra.mxu0 %v283
    %v423 = vpop.f32.mrf.mxu0
    %v424 = vadd.f32 0.0, %v423
    %v425 = vpop.f32.mrf.mxu0
    %v426 = vpop.f32.mrf.mxu0
    %v427 = vadd.f32 0.0, %v426
    %v428 = vpop.f32.mrf.mxu0
    %429 = vmatprep.mubr.bf16.mxu0 0
    %430 = vmatmul.mubr.bf16.gmra.mxu0 %v284
    %v431 = vpop.f32.mrf.mxu0
    %v432 = vadd.f32 0.0, %v431
    %v433 = vpop.f32.mrf.mxu0
    %v434 = vpop.f32.mrf.mxu0
    %v435 = vadd.f32 0.0, %v434
    %v436 = vpop.f32.mrf.mxu0
    %437 = vdwg.mxu0
    %v438 = vpack.c.bf16 %v379, %v376
    %v439 = vpack.c.bf16 %v387, %v384
    %v440 = vpack.c.bf16 %v395, %v392
    %v441 = vpack.c.bf16 %v403, %v400
    %v442 = vpack.c.bf16 %v411, %v408
    %v443 = vpack.c.bf16 %v419, %v416
    %v444 = vpack.c.bf16 %v427, %v424
    %v445 = vpack.c.bf16 %v435, %v432
    %v446 = vld [vmem:[#allocation8] sm:$0xf]
    %v447 = vld [vmem:[#allocation8 + $0x4] sm:$0xf]
    %v448 = vld [vmem:[#allocation8 + $0x8] sm:$0xf]
    %v449 = vld [vmem:[#allocation8 + $0xc] sm:$0xf]
    %v450 = vld [vmem:[#allocation8 + $0x10] sm:$0xf]
    %v451 = vld [vmem:[#allocation8 + $0x14] sm:$0xf]
    %v452 = vld [vmem:[#allocation8 + $0x18] sm:$0xf]
    %v453 = vld [vmem:[#allocation8 + $0x1c] sm:$0xf]
    %v454 = vld [vmem:[#allocation8 + $0x20] sm:$0xf]
    %v455 = vld [vmem:[#allocation8 + $0x24] sm:$0xf]
    %v456 = vld [vmem:[#allocation8 + $0x28] sm:$0xf]
    %v457 = vld [vmem:[#allocation8 + $0x2c] sm:$0xf]
    %v458 = vld [vmem:[#allocation8 + $0x30] sm:$0xf]
    %v459 = vld [vmem:[#allocation8 + $0x34] sm:$0xf]
    %v460 = vld [vmem:[#allocation8 + $0x38] sm:$0xf]
    %v461 = vld [vmem:[#allocation8 + $0x3c] sm:$0xf]
    %v462 = vld [vmem:[#allocation10] sm:$0xf]
    %v463 = vld [vmem:[#allocation10 + $0x4] sm:$0xf]
    %v464 = vld [vmem:[#allocation10 + $0x8] sm:$0xf]
    %v465 = vld [vmem:[#allocation10 + $0xc] sm:$0xf]
    %v466 = vld [vmem:[#allocation10 + $0x10] sm:$0xf]
    %v467 = vld [vmem:[#allocation10 + $0x14] sm:$0xf]
    %v468 = vld [vmem:[#allocation10 + $0x18] sm:$0xf]
    %v469 = vld [vmem:[#allocation10 + $0x1c] sm:$0xf]
    %v470 = vld [vmem:[#allocation10 + $0x20] sm:$0xf]
    %v471 = vld [vmem:[#allocation10 + $0x24] sm:$0xf]
    %v472 = vld [vmem:[#allocation10 + $0x28] sm:$0xf]
    %v473 = vld [vmem:[#allocation10 + $0x2c] sm:$0xf]
    %v474 = vld [vmem:[#allocation10 + $0x30] sm:$0xf]
    %v475 = vld [vmem:[#allocation10 + $0x34] sm:$0xf]
    %v476 = vld [vmem:[#allocation10 + $0x38] sm:$0xf]
    %v477 = vld [vmem:[#allocation10 + $0x3c] sm:$0xf]
    %v494 = vunpack.c.l.b16 %v462
    %v495 = vunpack.c.l.b16 %v463
    %v496 = vunpack.c.l.b16 %v464
    %v497 = vunpack.c.l.b16 %v465
    %v498 = vunpack.c.l.b16 %v466
    %v499 = vunpack.c.l.b16 %v467
    %v500 = vunpack.c.l.b16 %v468
    %v501 = vunpack.c.l.b16 %v469
    %v502 = vunpack.c.l.b16 %v470
    %v503 = vunpack.c.l.b16 %v471
    %v504 = vunpack.c.l.b16 %v472
    %v505 = vunpack.c.l.b16 %v473
    %v506 = vunpack.c.l.b16 %v474
    %v507 = vunpack.c.l.b16 %v475
    %v508 = vunpack.c.l.b16 %v476
    %v509 = vunpack.c.l.b16 %v477
    %v510 = vpack.c.b16 %v495, %v494
    %v511 = vpack.c.b16 %v497, %v496
    %v512 = vpack.c.b16 %v499, %v498
    %v513 = vpack.c.b16 %v501, %v500
    %v514 = vpack.c.b16 %v503, %v502
    %v515 = vpack.c.b16 %v505, %v504
    %v516 = vpack.c.b16 %v507, %v506
    %v517 = vpack.c.b16 %v509, %v508
    %526 = vmatprep.subr.bf16.mxu0 0
    %527 = vmatpush1.bf16.msra.mxu0 %v517
    %528 = vmatprep.subr.bf16.mxu0 0
    %529 = vmatpush1.bf16.msra.mxu0 %v516
    %530 = vmatprep.subr.bf16.mxu0 0
    %531 = vmatpush1.bf16.msra.mxu0 %v515
    %532 = vmatprep.subr.bf16.mxu0 0
    %533 = vmatpush1.bf16.msra.mxu0 %v514
    %534 = vmatprep.subr.bf16.mxu0 0
    %535 = vmatpush1.bf16.msra.mxu0 %v513
    %536 = vmatprep.subr.bf16.mxu0 0
    %537 = vmatpush1.bf16.msra.mxu0 %v512
    %538 = vmatprep.subr.bf16.mxu0 0
    %539 = vmatpush1.bf16.msra.mxu0 %v511
    %540 = vmatprep.subr.bf16.mxu0 0
    %541 = vmatpush1.bf16.msra.mxu0 %v510
    %542 = vmatprep.subr.bf16.mxu0 0
    %543 = vmatpush2.bf16.msra.mxu0 0
    %544 = vmatprep.subr.bf16.mxu0 0
    %545 = vmatpush2.bf16.msra.mxu0 0
    %546 = vmatprep.subr.bf16.mxu0 0
    %547 = vmatpush2.bf16.msra.mxu0 0
    %548 = vmatprep.subr.bf16.mxu0 0
    %549 = vmatpush2.bf16.msra.mxu0 0
    %550 = vmatprep.subr.bf16.mxu0 0
    %551 = vmatpush2.bf16.msra.mxu0 0
    %552 = vmatprep.subr.bf16.mxu0 0
    %553 = vmatpush2.bf16.msra.mxu0 0
    %554 = vmatprep.subr.bf16.mxu0 0
    %555 = vmatpush2.bf16.msra.mxu0 0
    %556 = vmatprep.subr.bf16.mxu0 0
    %557 = vmatpush2.bf16.msra.mxu0 0
    %558 = vmatprep.mubr.bf16.mxu0 0
    %559 = vmatmul.mubr.bf16.gmra.mxu0 %v325
    %v560 = vpop.f32.mrf.mxu0
    %v561 = vadd.f32 0.0, %v560
    %v562 = vpop.f32.mrf.mxu0
    %v563 = vpop.f32.mrf.mxu0
    %v564 = vadd.f32 0.0, %v563
    %v565 = vpop.f32.mrf.mxu0
    %566 = vmatprep.mubr.bf16.mxu0 0
    %567 = vmatmul.mubr.bf16.gmra.mxu0 %v326
    %v568 = vpop.f32.mrf.mxu0
    %v569 = vadd.f32 0.0, %v568
    %v570 = vpop.f32.mrf.mxu0
    %v571 = vpop.f32.mrf.mxu0
    %v572 = vadd.f32 0.0, %v571
    %v573 = vpop.f32.mrf.mxu0
    %574 = vmatprep.mubr.bf16.mxu0 0
    %575 = vmatmul.mubr.bf16.gmra.mxu0 %v327
    %v576 = vpop.f32.mrf.mxu0
    %v577 = vadd.f32 0.0, %v576
    %v578 = vpop.f32.mrf.mxu0
    %v579 = vpop.f32.mrf.mxu0
    %v580 = vadd.f32 0.0, %v579
    %v581 = vpop.f32.mrf.mxu0
    %582 = vmatprep.mubr.bf16.mxu0 0
    %583 = vmatmul.mubr.bf16.gmra.mxu0 %v328
    %v584 = vpop.f32.mrf.mxu0
    %v585 = vadd.f32 0.0, %v584
    %v586 = vpop.f32.mrf.mxu0
    %v587 = vpop.f32.mrf.mxu0
    %v588 = vadd.f32 0.0, %v587
    %v589 = vpop.f32.mrf.mxu0
    %590 = vmatprep.mubr.bf16.mxu0 0
    %591 = vmatmul.mubr.bf16.gmra.mxu0 %v329
    %v592 = vpop.f32.mrf.mxu0
    %v593 = vadd.f32 0.0, %v592
    %v594 = vpop.f32.mrf.mxu0
    %v595 = vpop.f32.mrf.mxu0
    %v596 = vadd.f32 0.0, %v595
    %v597 = vpop.f32.mrf.mxu0
    %598 = vmatprep.mubr.bf16.mxu0 0
    %599 = vmatmul.mubr.bf16.gmra.mxu0 %v330
    %v600 = vpop.f32.mrf.mxu0
    %v601 = vadd.f32 0.0, %v600
    %v602 = vpop.f32.mrf.mxu0
    %v603 = vpop.f32.mrf.mxu0
    %v604 = vadd.f32 0.0, %v603
    %v605 = vpop.f32.mrf.mxu0
    %606 = vmatprep.mubr.bf16.mxu0 0
    %607 = vmatmul.mubr.bf16.gmra.mxu0 %v331
    %v608 = vpop.f32.mrf.mxu0
    %v609 = vadd.f32 0.0, %v608
    %v610 = vpop.f32.mrf.mxu0
    %v611 = vpop.f32.mrf.mxu0
    %v612 = vadd.f32 0.0, %v611
    %v613 = vpop.f32.mrf.mxu0
    %614 = vmatprep.mubr.bf16.mxu0 0
    %615 = vmatmul.mubr.bf16.gmra.mxu0 %v332
    %v616 = vpop.f32.mrf.mxu0
    %v617 = vadd.f32 0.0, %v616
    %v618 = vpop.f32.mrf.mxu0
    %v619 = vpop.f32.mrf.mxu0
    %v620 = vadd.f32 0.0, %v619
    %v621 = vpop.f32.mrf.mxu0
    %622 = vdwg.mxu0
    %v639 = vunpack.c.l.b16 %v446
    %v640 = vunpack.c.l.b16 %v447
    %v641 = vunpack.c.l.b16 %v448
    %v642 = vunpack.c.l.b16 %v449
    %v643 = vunpack.c.l.b16 %v450
    %v644 = vunpack.c.l.b16 %v451
    %v645 = vunpack.c.l.b16 %v452
    %v646 = vunpack.c.l.b16 %v453
    %v647 = vunpack.c.l.b16 %v454
    %v648 = vunpack.c.l.b16 %v455
    %v649 = vunpack.c.l.b16 %v456
    %v650 = vunpack.c.l.b16 %v457
    %v651 = vunpack.c.l.b16 %v458
    %v652 = vunpack.c.l.b16 %v459
    %v653 = vunpack.c.l.b16 %v460
    %v654 = vunpack.c.l.b16 %v461
    %v655 = vpack.c.b16 %v640, %v639
    %v656 = vpack.c.b16 %v642, %v641
    %v657 = vpack.c.b16 %v644, %v643
    %v658 = vpack.c.b16 %v646, %v645
    %v659 = vpack.c.b16 %v648, %v647
    %v660 = vpack.c.b16 %v650, %v649
    %v661 = vpack.c.b16 %v652, %v651
    %v662 = vpack.c.b16 %v654, %v653
    %671 = vmatprep.subr.bf16.mxu0 0
    %672 = vmatpush1.bf16.msra.mxu0 %v662
    %673 = vmatprep.subr.bf16.mxu0 0
    %674 = vmatpush1.bf16.msra.mxu0 %v661
    %675 = vmatprep.subr.bf16.mxu0 0
    %676 = vmatpush1.bf16.msra.mxu0 %v660
    %677 = vmatprep.subr.bf16.mxu0 0
    %678 = vmatpush1.bf16.msra.mxu0 %v659
    %679 = vmatprep.subr.bf16.mxu0 0
    %680 = vmatpush1.bf16.msra.mxu0 %v658
    %681 = vmatprep.subr.bf16.mxu0 0
    %682 = vmatpush1.bf16.msra.mxu0 %v657
    %683 = vmatprep.subr.bf16.mxu0 0
    %684 = vmatpush1.bf16.msra.mxu0 %v656
    %685 = vmatprep.subr.bf16.mxu0 0
    %686 = vmatpush1.bf16.msra.mxu0 %v655
    %687 = vmatprep.subr.bf16.mxu0 0
    %688 = vmatpush2.bf16.msra.mxu0 0
    %689 = vmatprep.subr.bf16.mxu0 0
    %690 = vmatpush2.bf16.msra.mxu0 0
    %691 = vmatprep.subr.bf16.mxu0 0
    %692 = vmatpush2.bf16.msra.mxu0 0
    %693 = vmatprep.subr.bf16.mxu0 0
    %694 = vmatpush2.bf16.msra.mxu0 0
    %695 = vmatprep.subr.bf16.mxu0 0
    %696 = vmatpush2.bf16.msra.mxu0 0
    %697 = vmatprep.subr.bf16.mxu0 0
    %698 = vmatpush2.bf16.msra.mxu0 0
    %699 = vmatprep.subr.bf16.mxu0 0
    %700 = vmatpush2.bf16.msra.mxu0 0
    %701 = vmatprep.subr.bf16.mxu0 0
    %702 = vmatpush2.bf16.msra.mxu0 0
    %703 = vmatprep.mubr.bf16.mxu0 0
    %704 = vmatmul.mubr.bf16.gmra.mxu0 %v438
    %v705 = vpop.f32.mrf.mxu0
    %v706 = vadd.f32 %v561, %v705
    %v707 = vpop.f32.mrf.mxu0
    %v708 = vpop.f32.mrf.mxu0
    %v709 = vadd.f32 %v564, %v708
    %v710 = vpop.f32.mrf.mxu0
    %711 = vmatprep.mubr.bf16.mxu0 0
    %712 = vmatmul.mubr.bf16.gmra.mxu0 %v439
    %v713 = vpop.f32.mrf.mxu0
    %v714 = vadd.f32 %v569, %v713
    %v715 = vpop.f32.mrf.mxu0
    %v716 = vpop.f32.mrf.mxu0
    %v717 = vadd.f32 %v572, %v716
    %v718 = vpop.f32.mrf.mxu0
    %719 = vmatprep.mubr.bf16.mxu0 0
    %720 = vmatmul.mubr.bf16.gmra.mxu0 %v440
    %v721 = vpop.f32.mrf.mxu0
    %v722 = vadd.f32 %v577, %v721
    %v723 = vpop.f32.mrf.mxu0
    %v724 = vpop.f32.mrf.mxu0
    %v725 = vadd.f32 %v580, %v724
    %v726 = vpop.f32.mrf.mxu0
    %727 = vmatprep.mubr.bf16.mxu0 0
    %728 = vmatmul.mubr.bf16.gmra.mxu0 %v441
    %v729 = vpop.f32.mrf.mxu0
    %v730 = vadd.f32 %v585, %v729
    %v731 = vpop.f32.mrf.mxu0
    %v732 = vpop.f32.mrf.mxu0
    %v733 = vadd.f32 %v588, %v732
    %v734 = vpop.f32.mrf.mxu0
    %735 = vmatprep.mubr.bf16.mxu0 0
    %736 = vmatmul.mubr.bf16.gmra.mxu0 %v442
    %v737 = vpop.f32.mrf.mxu0
    %v738 = vadd.f32 %v593, %v737
    %v739 = vpop.f32.mrf.mxu0
    %v740 = vpop.f32.mrf.mxu0
    %v741 = vadd.f32 %v596, %v740
    %v742 = vpop.f32.mrf.mxu0
    %743 = vmatprep.mubr.bf16.mxu0 0
    %744 = vmatmul.mubr.bf16.gmra.mxu0 %v443
    %v745 = vpop.f32.mrf.mxu0
    %v746 = vadd.f32 %v601, %v745
    %v747 = vpop.f32.mrf.mxu0
    %v748 = vpop.f32.mrf.mxu0
    %v749 = vadd.f32 %v604, %v748
    %v750 = vpop.f32.mrf.mxu0
    %751 = vmatprep.mubr.bf16.mxu0 0
    %752 = vmatmul.mubr.bf16.gmra.mxu0 %v444
    %v753 = vpop.f32.mrf.mxu0
    %v754 = vadd.f32 %v609, %v753
    %v755 = vpop.f32.mrf.mxu0
    %v756 = vpop.f32.mrf.mxu0
    %v757 = vadd.f32 %v612, %v756
    %v758 = vpop.f32.mrf.mxu0
    %759 = vmatprep.mubr.bf16.mxu0 0
    %760 = vmatmul.mubr.bf16.gmra.mxu0 %v445
    %v761 = vpop.f32.mrf.mxu0
    %v762 = vadd.f32 %v617, %v761
    %v763 = vpop.f32.mrf.mxu0
    %v764 = vpop.f32.mrf.mxu0
    %v765 = vadd.f32 %v620, %v764
    %v766 = vpop.f32.mrf.mxu0
    %767 = vdwg.mxu0
    %v768 = vld [vmem:[%s5] sm:$0x1]
    %v770 = vlaneseq
    %v771 = vshrl.u32 %v770, 7
    %v772 = vsub.s32 0, %v771
    %v773 = vrot.slane %v768, %v772
    %v775 = vmul.f32 %v706, %v773
    %v776 = vmul.f32 %v709, %v773
    %v777 = vmul.f32 %v714, %v773
    %v778 = vmul.f32 %v717, %v773
    %v779 = vmul.f32 %v722, %v773
    %v780 = vmul.f32 %v725, %v773
    %v781 = vmul.f32 %v730, %v773
    %v782 = vmul.f32 %v733, %v773
    %v783 = vmul.f32 %v738, %v773
    %v784 = vmul.f32 %v741, %v773
    %v785 = vmul.f32 %v746, %v773
    %v786 = vmul.f32 %v749, %v773
    %v787 = vmul.f32 %v754, %v773
    %v788 = vmul.f32 %v757, %v773
    %v789 = vmul.f32 %v762, %v773
    %v790 = vmul.f32 %v765, %v773
    %v791 = vld [vmem:[%s6] sm:$0x1]
    %v793 = vlaneseq
    %v794 = vshrl.u32 %v793, 7
    %v795 = vsub.s32 0, %v794
    %v796 = vrot.slane %v791, %v795
    %v798 = vadd.f32 %v775, %v796
    %v799 = vadd.f32 %v776, %v796
    %v800 = vadd.f32 %v777, %v796
    %v801 = vadd.f32 %v778, %v796
    %v802 = vadd.f32 %v779, %v796
    %v803 = vadd.f32 %v780, %v796
    %v804 = vadd.f32 %v781, %v796
    %v805 = vadd.f32 %v782, %v796
    %v806 = vadd.f32 %v783, %v796
    %v807 = vadd.f32 %v784, %v796
    %v808 = vadd.f32 %v785, %v796
    %v809 = vadd.f32 %v786, %v796
    %v810 = vadd.f32 %v787, %v796
    %v811 = vadd.f32 %v788, %v796
    %v812 = vadd.f32 %v789, %v796
    %v813 = vadd.f32 %v790, %v796
    %v814 = vmax.f32 %v798, 0.0
    %v815 = vmax.f32 %v799, 0.0
    %v816 = vmax.f32 %v800, 0.0
    %v817 = vmax.f32 %v801, 0.0
    %v818 = vmax.f32 %v802, 0.0
    %v819 = vmax.f32 %v803, 0.0
    %v820 = vmax.f32 %v804, 0.0
    %v821 = vmax.f32 %v805, 0.0
    %v822 = vmax.f32 %v806, 0.0
    %v823 = vmax.f32 %v807, 0.0
    %v824 = vmax.f32 %v808, 0.0
    %v825 = vmax.f32 %v809, 0.0
    %v826 = vmax.f32 %v810, 0.0
    %v827 = vmax.f32 %v811, 0.0
    %v828 = vmax.f32 %v812, 0.0
    %v829 = vmax.f32 %v813, 0.0
    %v830 = vpack.c.bf16 %v815, %v814
    %v831 = vpack.c.bf16 %v817, %v816
    %v832 = vpack.c.bf16 %v819, %v818
    %v833 = vpack.c.bf16 %v821, %v820
    %v834 = vpack.c.bf16 %v823, %v822
    %v835 = vpack.c.bf16 %v825, %v824
    %v836 = vpack.c.bf16 %v827, %v826
    %v837 = vpack.c.bf16 %v829, %v828
    %838 = vmatprep.subr.bf16.mxu0 0
    %839 = vmatpush1.bf16.msra.mxu0 %v837
    %840 = vmatprep.subr.bf16.mxu0 0
    %841 = vmatpush1.bf16.msra.mxu0 %v836
    %842 = vmatprep.subr.bf16.mxu0 0
    %843 = vmatpush1.bf16.msra.mxu0 %v835
    %844 = vmatprep.subr.bf16.mxu0 0
    %845 = vmatpush1.bf16.msra.mxu0 %v834
    %846 = vmatprep.subr.bf16.mxu0 0
    %847 = vmatpush1.bf16.msra.mxu0 %v833
    %848 = vmatprep.subr.bf16.mxu0 0
    %849 = vmatpush1.bf16.msra.mxu0 %v832
    %850 = vmatprep.subr.bf16.mxu0 0
    %851 = vmatpush1.bf16.msra.mxu0 %v831
    %852 = vmatprep.subr.bf16.mxu0 0
    %853 = vmatpush1.bf16.msra.mxu0 %v830
    %854 = vmatprep.subr.bf16.mxu0 0
    %855 = vmatpush2.bf16.msra.mxu0 0
    %856 = vmatprep.subr.bf16.mxu0 0
    %857 = vmatpush2.bf16.msra.mxu0 0
    %858 = vmatprep.subr.bf16.mxu0 0
    %859 = vmatpush2.bf16.msra.mxu0 0
    %860 = vmatprep.subr.bf16.mxu0 0
    %861 = vmatpush2.bf16.msra.mxu0 0
    %862 = vmatprep.subr.bf16.mxu0 0
    %863 = vmatpush2.bf16.msra.mxu0 0
    %864 = vmatprep.subr.bf16.mxu0 0
    %865 = vmatpush2.bf16.msra.mxu0 0
    %866 = vmatprep.subr.bf16.mxu0 0
    %867 = vmatpush2.bf16.msra.mxu0 0
    %868 = vmatprep.subr.bf16.mxu0 0
    %869 = vmatpush2.bf16.msra.mxu0 0
    %870 = vmatprep.mubr.bf16.mxu0 0
    %871 = vmatmul.mubr.bf16.gmra.mxu0 %v277
    %v872 = vpop.f32.mrf.mxu0
    %v873 = vadd.f32 0.0, %v872
    %v874 = vpop.f32.mrf.mxu0
    %v875 = vpop.f32.mrf.mxu0
    %v876 = vadd.f32 0.0, %v875
    %v877 = vpop.f32.mrf.mxu0
    %878 = vmatprep.mubr.bf16.mxu0 0
    %879 = vmatmul.mubr.bf16.gmra.mxu0 %v278
    %v880 = vpop.f32.mrf.mxu0
    %v881 = vadd.f32 0.0, %v880
    %v882 = vpop.f32.mrf.mxu0
    %v883 = vpop.f32.mrf.mxu0
    %v884 = vadd.f32 0.0, %v883
    %v885 = vpop.f32.mrf.mxu0
    %886 = vmatprep.mubr.bf16.mxu0 0
    %887 = vmatmul.mubr.bf16.gmra.mxu0 %v279
    %v888 = vpop.f32.mrf.mxu0
    %v889 = vadd.f32 0.0, %v888
    %v890 = vpop.f32.mrf.mxu0
    %v891 = vpop.f32.mrf.mxu0
    %v892 = vadd.f32 0.0, %v891
    %v893 = vpop.f32.mrf.mxu0
    %894 = vmatprep.mubr.bf16.mxu0 0
    %895 = vmatmul.mubr.bf16.gmra.mxu0 %v280
    %v896 = vpop.f32.mrf.mxu0
    %v897 = vadd.f32 0.0, %v896
    %v898 = vpop.f32.mrf.mxu0
    %v899 = vpop.f32.mrf.mxu0
    %v900 = vadd.f32 0.0, %v899
    %v901 = vpop.f32.mrf.mxu0
    %902 = vmatprep.mubr.bf16.mxu0 0
    %903 = vmatmul.mubr.bf16.gmra.mxu0 %v281
    %v904 = vpop.f32.mrf.mxu0
    %v905 = vadd.f32 0.0, %v904
    %v906 = vpop.f32.mrf.mxu0
    %v907 = vpop.f32.mrf.mxu0
    %v908 = vadd.f32 0.0, %v907
    %v909 = vpop.f32.mrf.mxu0
    %910 = vmatprep.mubr.bf16.mxu0 0
    %911 = vmatmul.mubr.bf16.gmra.mxu0 %v282
    %v912 = vpop.f32.mrf.mxu0
    %v913 = vadd.f32 0.0, %v912
    %v914 = vpop.f32.mrf.mxu0
    %v915 = vpop.f32.mrf.mxu0
    %v916 = vadd.f32 0.0, %v915
    %v917 = vpop.f32.mrf.mxu0
    %918 = vmatprep.mubr.bf16.mxu0 0
    %919 = vmatmul.mubr.bf16.gmra.mxu0 %v283
    %v920 = vpop.f32.mrf.mxu0
    %v921 = vadd.f32 0.0, %v920
    %v922 = vpop.f32.mrf.mxu0
    %v923 = vpop.f32.mrf.mxu0
    %v924 = vadd.f32 0.0, %v923
    %v925 = vpop.f32.mrf.mxu0
    %926 = vmatprep.mubr.bf16.mxu0 0
    %927 = vmatmul.mubr.bf16.gmra.mxu0 %v284
    %v928 = vpop.f32.mrf.mxu0
    %v929 = vadd.f32 0.0, %v928
    %v930 = vpop.f32.mrf.mxu0
    %v931 = vpop.f32.mrf.mxu0
    %v932 = vadd.f32 0.0, %v931
    %v933 = vpop.f32.mrf.mxu0
    %934 = vdwg.mxu0
    %v935 = vpack.c.bf16 %v876, %v873
    %v936 = vpack.c.bf16 %v884, %v881
    %v937 = vpack.c.bf16 %v892, %v889
    %v938 = vpack.c.bf16 %v900, %v897
    %v939 = vpack.c.bf16 %v908, %v905
    %v940 = vpack.c.bf16 %v916, %v913
    %v941 = vpack.c.bf16 %v924, %v921
    %v942 = vpack.c.bf16 %v932, %v929
    %v943 = vld [vmem:[#allocation11] sm:$0xf]
    %v944 = vld [vmem:[#allocation11 + $0x4] sm:$0xf]
    %v945 = vld [vmem:[#allocation11 + $0x8] sm:$0xf]
    %v946 = vld [vmem:[#allocation11 + $0xc] sm:$0xf]
    %v947 = vld [vmem:[#allocation11 + $0x10] sm:$0xf]
    %v948 = vld [vmem:[#allocation11 + $0x14] sm:$0xf]
    %v949 = vld [vmem:[#allocation11 + $0x18] sm:$0xf]
    %v950 = vld [vmem:[#allocation11 + $0x1c] sm:$0xf]
    %v951 = vld [vmem:[#allocation11 + $0x20] sm:$0xf]
    %v952 = vld [vmem:[#allocation11 + $0x24] sm:$0xf]
    %v953 = vld [vmem:[#allocation11 + $0x28] sm:$0xf]
    %v954 = vld [vmem:[#allocation11 + $0x2c] sm:$0xf]
    %v955 = vld [vmem:[#allocation11 + $0x30] sm:$0xf]
    %v956 = vld [vmem:[#allocation11 + $0x34] sm:$0xf]
    %v957 = vld [vmem:[#allocation11 + $0x38] sm:$0xf]
    %v958 = vld [vmem:[#allocation11 + $0x3c] sm:$0xf]
    %v959 = vld [vmem:[#allocation13] sm:$0xf]
    %v960 = vld [vmem:[#allocation13 + $0x4] sm:$0xf]
    %v961 = vld [vmem:[#allocation13 + $0x8] sm:$0xf]
    %v962 = vld [vmem:[#allocation13 + $0xc] sm:$0xf]
    %v963 = vld [vmem:[#allocation13 + $0x10] sm:$0xf]
    %v964 = vld [vmem:[#allocation13 + $0x14] sm:$0xf]
    %v965 = vld [vmem:[#allocation13 + $0x18] sm:$0xf]
    %v966 = vld [vmem:[#allocation13 + $0x1c] sm:$0xf]
    %v967 = vld [vmem:[#allocation13 + $0x20] sm:$0xf]
    %v968 = vld [vmem:[#allocation13 + $0x24] sm:$0xf]
    %v969 = vld [vmem:[#allocation13 + $0x28] sm:$0xf]
    %v970 = vld [vmem:[#allocation13 + $0x2c] sm:$0xf]
    %v971 = vld [vmem:[#allocation13 + $0x30] sm:$0xf]
    %v972 = vld [vmem:[#allocation13 + $0x34] sm:$0xf]
    %v973 = vld [vmem:[#allocation13 + $0x38] sm:$0xf]
    %v974 = vld [vmem:[#allocation13 + $0x3c] sm:$0xf]
    %v991 = vunpack.c.l.b16 %v959
    %v992 = vunpack.c.l.b16 %v960
    %v993 = vunpack.c.l.b16 %v961
    %v994 = vunpack.c.l.b16 %v962
    %v995 = vunpack.c.l.b16 %v963
    %v996 = vunpack.c.l.b16 %v964
    %v997 = vunpack.c.l.b16 %v965
    %v998 = vunpack.c.l.b16 %v966
    %v999 = vunpack.c.l.b16 %v967
    %v1000 = vunpack.c.l.b16 %v968
    %v1001 = vunpack.c.l.b16 %v969
    %v1002 = vunpack.c.l.b16 %v970
    %v1003 = vunpack.c.l.b16 %v971
    %v1004 = vunpack.c.l.b16 %v972
    %v1005 = vunpack.c.l.b16 %v973
    %v1006 = vunpack.c.l.b16 %v974
    %v1007 = vpack.c.b16 %v992, %v991
    %v1008 = vpack.c.b16 %v994, %v993
    %v1009 = vpack.c.b16 %v996, %v995
    %v1010 = vpack.c.b16 %v998, %v997
    %v1011 = vpack.c.b16 %v1000, %v999
    %v1012 = vpack.c.b16 %v1002, %v1001
    %v1013 = vpack.c.b16 %v1004, %v1003
    %v1014 = vpack.c.b16 %v1006, %v1005
    %1023 = vmatprep.subr.bf16.mxu0 0
    %1024 = vmatpush1.bf16.msra.mxu0 %v1014
    %1025 = vmatprep.subr.bf16.mxu0 0
    %1026 = vmatpush1.bf16.msra.mxu0 %v1013
    %1027 = vmatprep.subr.bf16.mxu0 0
    %1028 = vmatpush1.bf16.msra.mxu0 %v1012
    %1029 = vmatprep.subr.bf16.mxu0 0
    %1030 = vmatpush1.bf16.msra.mxu0 %v1011
    %1031 = vmatprep.subr.bf16.mxu0 0
    %1032 = vmatpush1.bf16.msra.mxu0 %v1010
    %1033 = vmatprep.subr.bf16.mxu0 0
    %1034 = vmatpush1.bf16.msra.mxu0 %v1009
    %1035 = vmatprep.subr.bf16.mxu0 0
    %1036 = vmatpush1.bf16.msra.mxu0 %v1008
    %1037 = vmatprep.subr.bf16.mxu0 0
    %1038 = vmatpush1.bf16.msra.mxu0 %v1007
    %1039 = vmatprep.subr.bf16.mxu0 0
    %1040 = vmatpush2.bf16.msra.mxu0 0
    %1041 = vmatprep.subr.bf16.mxu0 0
    %1042 = vmatpush2.bf16.msra.mxu0 0
    %1043 = vmatprep.subr.bf16.mxu0 0
    %1044 = vmatpush2.bf16.msra.mxu0 0
    %1045 = vmatprep.subr.bf16.mxu0 0
    %1046 = vmatpush2.bf16.msra.mxu0 0
    %1047 = vmatprep.subr.bf16.mxu0 0
    %1048 = vmatpush2.bf16.msra.mxu0 0
    %1049 = vmatprep.subr.bf16.mxu0 0
    %1050 = vmatpush2.bf16.msra.mxu0 0
    %1051 = vmatprep.subr.bf16.mxu0 0
    %1052 = vmatpush2.bf16.msra.mxu0 0
    %1053 = vmatprep.subr.bf16.mxu0 0
    %1054 = vmatpush2.bf16.msra.mxu0 0
    %1055 = vmatprep.mubr.bf16.mxu0 0
    %1056 = vmatmul.mubr.bf16.gmra.mxu0 %v830
    %v1057 = vpop.f32.mrf.mxu0
    %v1058 = vadd.f32 0.0, %v1057
    %v1059 = vpop.f32.mrf.mxu0
    %v1060 = vpop.f32.mrf.mxu0
    %v1061 = vadd.f32 0.0, %v1060
    %v1062 = vpop.f32.mrf.mxu0
    %1063 = vmatprep.mubr.bf16.mxu0 0
    %1064 = vmatmul.mubr.bf16.gmra.mxu0 %v831
    %v1065 = vpop.f32.mrf.mxu0
    %v1066 = vadd.f32 0.0, %v1065
    %v1067 = vpop.f32.mrf.mxu0
    %v1068 = vpop.f32.mrf.mxu0
    %v1069 = vadd.f32 0.0, %v1068
    %v1070 = vpop.f32.mrf.mxu0
    %1071 = vmatprep.mubr.bf16.mxu0 0
    %1072 = vmatmul.mubr.bf16.gmra.mxu0 %v832
    %v1073 = vpop.f32.mrf.mxu0
    %v1074 = vadd.f32 0.0, %v1073
    %v1075 = vpop.f32.mrf.mxu0
    %v1076 = vpop.f32.mrf.mxu0
    %v1077 = vadd.f32 0.0, %v1076
    %v1078 = vpop.f32.mrf.mxu0
    %1079 = vmatprep.mubr.bf16.mxu0 0
    %1080 = vmatmul.mubr.bf16.gmra.mxu0 %v833
    %v1081 = vpop.f32.mrf.mxu0
    %v1082 = vadd.f32 0.0, %v1081
    %v1083 = vpop.f32.mrf.mxu0
    %v1084 = vpop.f32.mrf.mxu0
    %v1085 = vadd.f32 0.0, %v1084
    %v1086 = vpop.f32.mrf.mxu0
    %1087 = vmatprep.mubr.bf16.mxu0 0
    %1088 = vmatmul.mubr.bf16.gmra.mxu0 %v834
    %v1089 = vpop.f32.mrf.mxu0
    %v1090 = vadd.f32 0.0, %v1089
    %v1091 = vpop.f32.mrf.mxu0
    %v1092 = vpop.f32.mrf.mxu0
    %v1093 = vadd.f32 0.0, %v1092
    %v1094 = vpop.f32.mrf.mxu0
    %1095 = vmatprep.mubr.bf16.mxu0 0
    %1096 = vmatmul.mubr.bf16.gmra.mxu0 %v835
    %v1097 = vpop.f32.mrf.mxu0
    %v1098 = vadd.f32 0.0, %v1097
    %v1099 = vpop.f32.mrf.mxu0
    %v1100 = vpop.f32.mrf.mxu0
    %v1101 = vadd.f32 0.0, %v1100
    %v1102 = vpop.f32.mrf.mxu0
    %1103 = vmatprep.mubr.bf16.mxu0 0
    %1104 = vmatmul.mubr.bf16.gmra.mxu0 %v836
    %v1105 = vpop.f32.mrf.mxu0
    %v1106 = vadd.f32 0.0, %v1105
    %v1107 = vpop.f32.mrf.mxu0
    %v1108 = vpop.f32.mrf.mxu0
    %v1109 = vadd.f32 0.0, %v1108
    %v1110 = vpop.f32.mrf.mxu0
    %1111 = vmatprep.mubr.bf16.mxu0 0
    %1112 = vmatmul.mubr.bf16.gmra.mxu0 %v837
    %v1113 = vpop.f32.mrf.mxu0
    %v1114 = vadd.f32 0.0, %v1113
    %v1115 = vpop.f32.mrf.mxu0
    %v1116 = vpop.f32.mrf.mxu0
    %v1117 = vadd.f32 0.0, %v1116
    %v1118 = vpop.f32.mrf.mxu0
    %1119 = vdwg.mxu0
    %v1136 = vunpack.c.l.b16 %v943
    %v1137 = vunpack.c.l.b16 %v944
    %v1138 = vunpack.c.l.b16 %v945
    %v1139 = vunpack.c.l.b16 %v946
    %v1140 = vunpack.c.l.b16 %v947
    %v1141 = vunpack.c.l.b16 %v948
    %v1142 = vunpack.c.l.b16 %v949
    %v1143 = vunpack.c.l.b16 %v950
    %v1144 = vunpack.c.l.b16 %v951
    %v1145 = vunpack.c.l.b16 %v952
    %v1146 = vunpack.c.l.b16 %v953
    %v1147 = vunpack.c.l.b16 %v954
    %v1148 = vunpack.c.l.b16 %v955
    %v1149 = vunpack.c.l.b16 %v956
    %v1150 = vunpack.c.l.b16 %v957
    %v1151 = vunpack.c.l.b16 %v958
    %v1152 = vpack.c.b16 %v1137, %v1136
    %v1153 = vpack.c.b16 %v1139, %v1138
    %v1154 = vpack.c.b16 %v1141, %v1140
    %v1155 = vpack.c.b16 %v1143, %v1142
    %v1156 = vpack.c.b16 %v1145, %v1144
    %v1157 = vpack.c.b16 %v1147, %v1146
    %v1158 = vpack.c.b16 %v1149, %v1148
    %v1159 = vpack.c.b16 %v1151, %v1150
    %1168 = vmatprep.subr.bf16.mxu0 0
    %1169 = vmatpush1.bf16.msra.mxu0 %v1159
    %1170 = vmatprep.subr.bf16.mxu0 0
    %1171 = vmatpush1.bf16.msra.mxu0 %v1158
    %1172 = vmatprep.subr.bf16.mxu0 0
    %1173 = vmatpush1.bf16.msra.mxu0 %v1157
    %1174 = vmatprep.subr.bf16.mxu0 0
    %1175 = vmatpush1.bf16.msra.mxu0 %v1156
    %1176 = vmatprep.subr.bf16.mxu0 0
    %1177 = vmatpush1.bf16.msra.mxu0 %v1155
    %1178 = vmatprep.subr.bf16.mxu0 0
    %1179 = vmatpush1.bf16.msra.mxu0 %v1154
    %1180 = vmatprep.subr.bf16.mxu0 0
    %1181 = vmatpush1.bf16.msra.mxu0 %v1153
    %1182 = vmatprep.subr.bf16.mxu0 0
    %1183 = vmatpush1.bf16.msra.mxu0 %v1152
    %1184 = vmatprep.subr.bf16.mxu0 0
    %1185 = vmatpush2.bf16.msra.mxu0 0
    %1186 = vmatprep.subr.bf16.mxu0 0
    %1187 = vmatpush2.bf16.msra.mxu0 0
    %1188 = vmatprep.subr.bf16.mxu0 0
    %1189 = vmatpush2.bf16.msra.mxu0 0
    %1190 = vmatprep.subr.bf16.mxu0 0
    %1191 = vmatpush2.bf16.msra.mxu0 0
    %1192 = vmatprep.subr.bf16.mxu0 0
    %1193 = vmatpush2.bf16.msra.mxu0 0
    %1194 = vmatprep.subr.bf16.mxu0 0
    %1195 = vmatpush2.bf16.msra.mxu0 0
    %1196 = vmatprep.subr.bf16.mxu0 0
    %1197 = vmatpush2.bf16.msra.mxu0 0
    %1198 = vmatprep.subr.bf16.mxu0 0
    %1199 = vmatpush2.bf16.msra.mxu0 0
    %1200 = vmatprep.mubr.bf16.mxu0 0
    %1201 = vmatmul.mubr.bf16.gmra.mxu0 %v935
    %v1202 = vpop.f32.mrf.mxu0
    %v1203 = vadd.f32 %v1058, %v1202
    %v1204 = vpop.f32.mrf.mxu0
    %v1205 = vpop.f32.mrf.mxu0
    %v1206 = vadd.f32 %v1061, %v1205
    %v1207 = vpop.f32.mrf.mxu0
    %1208 = vmatprep.mubr.bf16.mxu0 0
    %1209 = vmatmul.mubr.bf16.gmra.mxu0 %v936
    %v1210 = vpop.f32.mrf.mxu0
    %v1211 = vadd.f32 %v1066, %v1210
    %v1212 = vpop.f32.mrf.mxu0
    %v1213 = vpop.f32.mrf.mxu0
    %v1214 = vadd.f32 %v1069, %v1213
    %v1215 = vpop.f32.mrf.mxu0
    %1216 = vmatprep.mubr.bf16.mxu0 0
    %1217 = vmatmul.mubr.bf16.gmra.mxu0 %v937
    %v1218 = vpop.f32.mrf.mxu0
    %v1219 = vadd.f32 %v1074, %v1218
    %v1220 = vpop.f32.mrf.mxu0
    %v1221 = vpop.f32.mrf.mxu0
    %v1222 = vadd.f32 %v1077, %v1221
    %v1223 = vpop.f32.mrf.mxu0
    %1224 = vmatprep.mubr.bf16.mxu0 0
    %1225 = vmatmul.mubr.bf16.gmra.mxu0 %v938
    %v1226 = vpop.f32.mrf.mxu0
    %v1227 = vadd.f32 %v1082, %v1226
    %v1228 = vpop.f32.mrf.mxu0
    %v1229 = vpop.f32.mrf.mxu0
    %v1230 = vadd.f32 %v1085, %v1229
    %v1231 = vpop.f32.mrf.mxu0
    %1232 = vmatprep.mubr.bf16.mxu0 0
    %1233 = vmatmul.mubr.bf16.gmra.mxu0 %v939
    %v1234 = vpop.f32.mrf.mxu0
    %v1235 = vadd.f32 %v1090, %v1234
    %v1236 = vpop.f32.mrf.mxu0
    %v1237 = vpop.f32.mrf.mxu0
    %v1238 = vadd.f32 %v1093, %v1237
    %v1239 = vpop.f32.mrf.mxu0
    %1240 = vmatprep.mubr.bf16.mxu0 0
    %1241 = vmatmul.mubr.bf16.gmra.mxu0 %v940
    %v1242 = vpop.f32.mrf.mxu0
    %v1243 = vadd.f32 %v1098, %v1242
    %v1244 = vpop.f32.mrf.mxu0
    %v1245 = vpop.f32.mrf.mxu0
    %v1246 = vadd.f32 %v1101, %v1245
    %v1247 = vpop.f32.mrf.mxu0
    %1248 = vmatprep.mubr.bf16.mxu0 0
    %1249 = vmatmul.mubr.bf16.gmra.mxu0 %v941
    %v1250 = vpop.f32.mrf.mxu0
    %v1251 = vadd.f32 %v1106, %v1250
    %v1252 = vpop.f32.mrf.mxu0
    %v1253 = vpop.f32.mrf.mxu0
    %v1254 = vadd.f32 %v1109, %v1253
    %v1255 = vpop.f32.mrf.mxu0
    %1256 = vmatprep.mubr.bf16.mxu0 0
    %1257 = vmatmul.mubr.bf16.gmra.mxu0 %v942
    %v1258 = vpop.f32.mrf.mxu0
    %v1259 = vadd.f32 %v1114, %v1258
    %v1260 = vpop.f32.mrf.mxu0
    %v1261 = vpop.f32.mrf.mxu0
    %v1262 = vadd.f32 %v1117, %v1261
    %v1263 = vpop.f32.mrf.mxu0
    %1264 = vdwg.mxu0
    %v1265 = vld [vmem:[%s9] sm:$0x1]
    %v1267 = vlaneseq
    %v1268 = vshrl.u32 %v1267, 7
    %v1269 = vsub.s32 0, %v1268
    %v1270 = vrot.slane %v1265, %v1269
    %v1272 = vmul.f32 %v1203, %v1270
    %v1273 = vmul.f32 %v1206, %v1270
    %v1274 = vmul.f32 %v1211, %v1270
    %v1275 = vmul.f32 %v1214, %v1270
    %v1276 = vmul.f32 %v1219, %v1270
    %v1277 = vmul.f32 %v1222, %v1270
    %v1278 = vmul.f32 %v1227, %v1270
    %v1279 = vmul.f32 %v1230, %v1270
    %v1280 = vmul.f32 %v1235, %v1270
    %v1281 = vmul.f32 %v1238, %v1270
    %v1282 = vmul.f32 %v1243, %v1270
    %v1283 = vmul.f32 %v1246, %v1270
    %v1284 = vmul.f32 %v1251, %v1270
    %v1285 = vmul.f32 %v1254, %v1270
    %v1286 = vmul.f32 %v1259, %v1270
    %v1287 = vmul.f32 %v1262, %v1270
    %v1288 = vld [vmem:[%s10] sm:$0x1]
    %v1290 = vlaneseq
    %v1291 = vshrl.u32 %v1290, 7
    %v1292 = vsub.s32 0, %v1291
    %v1293 = vrot.slane %v1288, %v1292
    %v1295 = vadd.f32 %v1272, %v1293
    %v1296 = vadd.f32 %v1273, %v1293
    %v1297 = vadd.f32 %v1274, %v1293
    %v1298 = vadd.f32 %v1275, %v1293
    %v1299 = vadd.f32 %v1276, %v1293
    %v1300 = vadd.f32 %v1277, %v1293
    %v1301 = vadd.f32 %v1278, %v1293
    %v1302 = vadd.f32 %v1279, %v1293
    %v1303 = vadd.f32 %v1280, %v1293
    %v1304 = vadd.f32 %v1281, %v1293
    %v1305 = vadd.f32 %v1282, %v1293
    %v1306 = vadd.f32 %v1283, %v1293
    %v1307 = vadd.f32 %v1284, %v1293
    %v1308 = vadd.f32 %v1285, %v1293
    %v1309 = vadd.f32 %v1286, %v1293
    %v1310 = vadd.f32 %v1287, %v1293
    %v1311 = vmax.f32 %v1295, 0.0
    %v1312 = vmax.f32 %v1296, 0.0
    %v1313 = vmax.f32 %v1297, 0.0
    %v1314 = vmax.f32 %v1298, 0.0
    %v1315 = vmax.f32 %v1299, 0.0
    %v1316 = vmax.f32 %v1300, 0.0
    %v1317 = vmax.f32 %v1301, 0.0
    %v1318 = vmax.f32 %v1302, 0.0
    %v1319 = vmax.f32 %v1303, 0.0
    %v1320 = vmax.f32 %v1304, 0.0
    %v1321 = vmax.f32 %v1305, 0.0
    %v1322 = vmax.f32 %v1306, 0.0
    %v1323 = vmax.f32 %v1307, 0.0
    %v1324 = vmax.f32 %v1308, 0.0
    %v1325 = vmax.f32 %v1309, 0.0
    %v1326 = vmax.f32 %v1310, 0.0
    %v1327 = vpack.c.bf16 %v1312, %v1311
    %v1328 = vpack.c.bf16 %v1314, %v1313
    %v1329 = vpack.c.bf16 %v1316, %v1315
    %v1330 = vpack.c.bf16 %v1318, %v1317
    %v1331 = vpack.c.bf16 %v1320, %v1319
    %v1332 = vpack.c.bf16 %v1322, %v1321
    %v1333 = vpack.c.bf16 %v1324, %v1323
    %v1334 = vpack.c.bf16 %v1326, %v1325
    %1335 = vmatprep.subr.bf16.mxu0 0
    %1336 = vmatpush1.bf16.msra.mxu0 %v1334
    %1337 = vmatprep.subr.bf16.mxu0 0
    %1338 = vmatpush1.bf16.msra.mxu0 %v1333
    %1339 = vmatprep.subr.bf16.mxu0 0
    %1340 = vmatpush1.bf16.msra.mxu0 %v1332
    %1341 = vmatprep.subr.bf16.mxu0 0
    %1342 = vmatpush1.bf16.msra.mxu0 %v1331
    %1343 = vmatprep.subr.bf16.mxu0 0
    %1344 = vmatpush1.bf16.msra.mxu0 %v1330
    %1345 = vmatprep.subr.bf16.mxu0 0
    %1346 = vmatpush1.bf16.msra.mxu0 %v1329
    %1347 = vmatprep.subr.bf16.mxu0 0
    %1348 = vmatpush1.bf16.msra.mxu0 %v1328
    %1349 = vmatprep.subr.bf16.mxu0 0
    %1350 = vmatpush1.bf16.msra.mxu0 %v1327
    %1351 = vmatprep.subr.bf16.mxu0 0
    %1352 = vmatpush2.bf16.msra.mxu0 0
    %1353 = vmatprep.subr.bf16.mxu0 0
    %1354 = vmatpush2.bf16.msra.mxu0 0
    %1355 = vmatprep.subr.bf16.mxu0 0
    %1356 = vmatpush2.bf16.msra.mxu0 0
    %1357 = vmatprep.subr.bf16.mxu0 0
    %1358 = vmatpush2.bf16.msra.mxu0 0
    %1359 = vmatprep.subr.bf16.mxu0 0
    %1360 = vmatpush2.bf16.msra.mxu0 0
    %1361 = vmatprep.subr.bf16.mxu0 0
    %1362 = vmatpush2.bf16.msra.mxu0 0
    %1363 = vmatprep.subr.bf16.mxu0 0
    %1364 = vmatpush2.bf16.msra.mxu0 0
    %1365 = vmatprep.subr.bf16.mxu0 0
    %1366 = vmatpush2.bf16.msra.mxu0 0
    %1367 = vmatprep.mubr.bf16.mxu0 0
    %1368 = vmatmul.mubr.bf16.gmra.mxu0 %v277
    %v1369 = vpop.f32.mrf.mxu0
    %v1370 = vadd.f32 0.0, %v1369
    %v1371 = vpop.f32.mrf.mxu0
    %v1372 = vpop.f32.mrf.mxu0
    %v1373 = vadd.f32 0.0, %v1372
    %v1374 = vpop.f32.mrf.mxu0
    %1375 = vmatprep.mubr.bf16.mxu0 0
    %1376 = vmatmul.mubr.bf16.gmra.mxu0 %v278
    %v1377 = vpop.f32.mrf.mxu0
    %v1378 = vadd.f32 0.0, %v1377
    %v1379 = vpop.f32.mrf.mxu0
    %v1380 = vpop.f32.mrf.mxu0
    %v1381 = vadd.f32 0.0, %v1380
    %v1382 = vpop.f32.mrf.mxu0
    %1383 = vmatprep.mubr.bf16.mxu0 0
    %1384 = vmatmul.mubr.bf16.gmra.mxu0 %v279
    %v1385 = vpop.f32.mrf.mxu0
    %v1386 = vadd.f32 0.0, %v1385
    %v1387 = vpop.f32.mrf.mxu0
    %v1388 = vpop.f32.mrf.mxu0
    %v1389 = vadd.f32 0.0, %v1388
    %v1390 = vpop.f32.mrf.mxu0
    %1391 = vmatprep.mubr.bf16.mxu0 0
    %1392 = vmatmul.mubr.bf16.gmra.mxu0 %v280
    %v1393 = vpop.f32.mrf.mxu0
    %v1394 = vadd.f32 0.0, %v1393
    %v1395 = vpop.f32.mrf.mxu0
    %v1396 = vpop.f32.mrf.mxu0
    %v1397 = vadd.f32 0.0, %v1396
    %v1398 = vpop.f32.mrf.mxu0
    %1399 = vmatprep.mubr.bf16.mxu0 0
    %1400 = vmatmul.mubr.bf16.gmra.mxu0 %v281
    %v1401 = vpop.f32.mrf.mxu0
    %v1402 = vadd.f32 0.0, %v1401
    %v1403 = vpop.f32.mrf.mxu0
    %v1404 = vpop.f32.mrf.mxu0
    %v1405 = vadd.f32 0.0, %v1404
    %v1406 = vpop.f32.mrf.mxu0
    %1407 = vmatprep.mubr.bf16.mxu0 0
    %1408 = vmatmul.mubr.bf16.gmra.mxu0 %v282
    %v1409 = vpop.f32.mrf.mxu0
    %v1410 = vadd.f32 0.0, %v1409
    %v1411 = vpop.f32.mrf.mxu0
    %v1412 = vpop.f32.mrf.mxu0
    %v1413 = vadd.f32 0.0, %v1412
    %v1414 = vpop.f32.mrf.mxu0
    %1415 = vmatprep.mubr.bf16.mxu0 0
    %1416 = vmatmul.mubr.bf16.gmra.mxu0 %v283
    %v1417 = vpop.f32.mrf.mxu0
    %v1418 = vadd.f32 0.0, %v1417
    %v1419 = vpop.f32.mrf.mxu0
    %v1420 = vpop.f32.mrf.mxu0
    %v1421 = vadd.f32 0.0, %v1420
    %v1422 = vpop.f32.mrf.mxu0
    %1423 = vmatprep.mubr.bf16.mxu0 0
    %1424 = vmatmul.mubr.bf16.gmra.mxu0 %v284
    %v1425 = vpop.f32.mrf.mxu0
    %v1426 = vadd.f32 0.0, %v1425
    %v1427 = vpop.f32.mrf.mxu0
    %v1428 = vpop.f32.mrf.mxu0
    %v1429 = vadd.f32 0.0, %v1428
    %v1430 = vpop.f32.mrf.mxu0
    %1431 = vdwg.mxu0
    %v1432 = vpack.c.bf16 %v1373, %v1370
    %v1433 = vpack.c.bf16 %v1381, %v1378
    %v1434 = vpack.c.bf16 %v1389, %v1386
    %v1435 = vpack.c.bf16 %v1397, %v1394
    %v1436 = vpack.c.bf16 %v1405, %v1402
    %v1437 = vpack.c.bf16 %v1413, %v1410
    %v1438 = vpack.c.bf16 %v1421, %v1418
    %v1439 = vpack.c.bf16 %v1429, %v1426
    %v1440 = vld [vmem:[#allocation14] sm:$0xf]
    %v1441 = vld [vmem:[#allocation14 + $0x4] sm:$0xf]
    %v1442 = vld [vmem:[#allocation14 + $0x8] sm:$0xf]
    %v1443 = vld [vmem:[#allocation14 + $0xc] sm:$0xf]
    %v1444 = vld [vmem:[#allocation14 + $0x10] sm:$0xf]
    %v1445 = vld [vmem:[#allocation14 + $0x14] sm:$0xf]
    %v1446 = vld [vmem:[#allocation14 + $0x18] sm:$0xf]
    %v1447 = vld [vmem:[#allocation14 + $0x1c] sm:$0xf]
    %v1448 = vld [vmem:[#allocation14 + $0x20] sm:$0xf]
    %v1449 = vld [vmem:[#allocation14 + $0x24] sm:$0xf]
    %v1450 = vld [vmem:[#allocation14 + $0x28] sm:$0xf]
    %v1451 = vld [vmem:[#allocation14 + $0x2c] sm:$0xf]
    %v1452 = vld [vmem:[#allocation14 + $0x30] sm:$0xf]
    %v1453 = vld [vmem:[#allocation14 + $0x34] sm:$0xf]
    %v1454 = vld [vmem:[#allocation14 + $0x38] sm:$0xf]
    %v1455 = vld [vmem:[#allocation14 + $0x3c] sm:$0xf]
    %v1456 = vld [vmem:[#allocation16] sm:$0xf]
    %v1457 = vld [vmem:[#allocation16 + $0x4] sm:$0xf]
    %v1458 = vld [vmem:[#allocation16 + $0x8] sm:$0xf]
    %v1459 = vld [vmem:[#allocation16 + $0xc] sm:$0xf]
    %v1460 = vld [vmem:[#allocation16 + $0x10] sm:$0xf]
    %v1461 = vld [vmem:[#allocation16 + $0x14] sm:$0xf]
    %v1462 = vld [vmem:[#allocation16 + $0x18] sm:$0xf]
    %v1463 = vld [vmem:[#allocation16 + $0x1c] sm:$0xf]
    %v1464 = vld [vmem:[#allocation16 + $0x20] sm:$0xf]
    %v1465 = vld [vmem:[#allocation16 + $0x24] sm:$0xf]
    %v1466 = vld [vmem:[#allocation16 + $0x28] sm:$0xf]
    %v1467 = vld [vmem:[#allocation16 + $0x2c] sm:$0xf]
    %v1468 = vld [vmem:[#allocation16 + $0x30] sm:$0xf]
    %v1469 = vld [vmem:[#allocation16 + $0x34] sm:$0xf]
    %v1470 = vld [vmem:[#allocation16 + $0x38] sm:$0xf]
    %v1471 = vld [vmem:[#allocation16 + $0x3c] sm:$0xf]
    %v1488 = vunpack.c.l.b16 %v1456
    %v1489 = vunpack.c.l.b16 %v1457
    %v1490 = vunpack.c.l.b16 %v1458
    %v1491 = vunpack.c.l.b16 %v1459
    %v1492 = vunpack.c.l.b16 %v1460
    %v1493 = vunpack.c.l.b16 %v1461
    %v1494 = vunpack.c.l.b16 %v1462
    %v1495 = vunpack.c.l.b16 %v1463
    %v1496 = vunpack.c.l.b16 %v1464
    %v1497 = vunpack.c.l.b16 %v1465
    %v1498 = vunpack.c.l.b16 %v1466
    %v1499 = vunpack.c.l.b16 %v1467
    %v1500 = vunpack.c.l.b16 %v1468
    %v1501 = vunpack.c.l.b16 %v1469
    %v1502 = vunpack.c.l.b16 %v1470
    %v1503 = vunpack.c.l.b16 %v1471
    %v1504 = vpack.c.b16 %v1489, %v1488
    %v1505 = vpack.c.b16 %v1491, %v1490
    %v1506 = vpack.c.b16 %v1493, %v1492
    %v1507 = vpack.c.b16 %v1495, %v1494
    %v1508 = vpack.c.b16 %v1497, %v1496
    %v1509 = vpack.c.b16 %v1499, %v1498
    %v1510 = vpack.c.b16 %v1501, %v1500
    %v1511 = vpack.c.b16 %v1503, %v1502
    %1520 = vmatprep.subr.bf16.mxu0 0
    %1521 = vmatpush1.bf16.msra.mxu0 %v1511
    %1522 = vmatprep.subr.bf16.mxu0 0
    %1523 = vmatpush1.bf16.msra.mxu0 %v1510
    %1524 = vmatprep.subr.bf16.mxu0 0
    %1525 = vmatpush1.bf16.msra.mxu0 %v1509
    %1526 = vmatprep.subr.bf16.mxu0 0
    %1527 = vmatpush1.bf16.msra.mxu0 %v1508
    %1528 = vmatprep.subr.bf16.mxu0 0
    %1529 = vmatpush1.bf16.msra.mxu0 %v1507
    %1530 = vmatprep.subr.bf16.mxu0 0
    %1531 = vmatpush1.bf16.msra.mxu0 %v1506
    %1532 = vmatprep.subr.bf16.mxu0 0
    %1533 = vmatpush1.bf16.msra.mxu0 %v1505
    %1534 = vmatprep.subr.bf16.mxu0 0
    %1535 = vmatpush1.bf16.msra.mxu0 %v1504
    %1536 = vmatprep.subr.bf16.mxu0 0
    %1537 = vmatpush2.bf16.msra.mxu0 0
    %1538 = vmatprep.subr.bf16.mxu0 0
    %1539 = vmatpush2.bf16.msra.mxu0 0
    %1540 = vmatprep.subr.bf16.mxu0 0
    %1541 = vmatpush2.bf16.msra.mxu0 0
    %1542 = vmatprep.subr.bf16.mxu0 0
    %1543 = vmatpush2.bf16.msra.mxu0 0
    %1544 = vmatprep.subr.bf16.mxu0 0
    %1545 = vmatpush2.bf16.msra.mxu0 0
    %1546 = vmatprep.subr.bf16.mxu0 0
    %1547 = vmatpush2.bf16.msra.mxu0 0
    %1548 = vmatprep.subr.bf16.mxu0 0
    %1549 = vmatpush2.bf16.msra.mxu0 0
    %1550 = vmatprep.subr.bf16.mxu0 0
    %1551 = vmatpush2.bf16.msra.mxu0 0
    %1552 = vmatprep.mubr.bf16.mxu0 0
    %1553 = vmatmul.mubr.bf16.gmra.mxu0 %v1327
    %v1554 = vpop.f32.mrf.mxu0
    %v1555 = vadd.f32 0.0, %v1554
    %v1556 = vpop.f32.mrf.mxu0
    %v1557 = vpop.f32.mrf.mxu0
    %v1558 = vadd.f32 0.0, %v1557
    %v1559 = vpop.f32.mrf.mxu0
    %1560 = vmatprep.mubr.bf16.mxu0 0
    %1561 = vmatmul.mubr.bf16.gmra.mxu0 %v1328
    %v1562 = vpop.f32.mrf.mxu0
    %v1563 = vadd.f32 0.0, %v1562
    %v1564 = vpop.f32.mrf.mxu0
    %v1565 = vpop.f32.mrf.mxu0
    %v1566 = vadd.f32 0.0, %v1565
    %v1567 = vpop.f32.mrf.mxu0
    %1568 = vmatprep.mubr.bf16.mxu0 0
    %1569 = vmatmul.mubr.bf16.gmra.mxu0 %v1329
    %v1570 = vpop.f32.mrf.mxu0
    %v1571 = vadd.f32 0.0, %v1570
    %v1572 = vpop.f32.mrf.mxu0
    %v1573 = vpop.f32.mrf.mxu0
    %v1574 = vadd.f32 0.0, %v1573
    %v1575 = vpop.f32.mrf.mxu0
    %1576 = vmatprep.mubr.bf16.mxu0 0
    %1577 = vmatmul.mubr.bf16.gmra.mxu0 %v1330
    %v1578 = vpop.f32.mrf.mxu0
    %v1579 = vadd.f32 0.0, %v1578
    %v1580 = vpop.f32.mrf.mxu0
    %v1581 = vpop.f32.mrf.mxu0
    %v1582 = vadd.f32 0.0, %v1581
    %v1583 = vpop.f32.mrf.mxu0
    %1584 = vmatprep.mubr.bf16.mxu0 0
    %1585 = vmatmul.mubr.bf16.gmra.mxu0 %v1331
    %v1586 = vpop.f32.mrf.mxu0
    %v1587 = vadd.f32 0.0, %v1586
    %v1588 = vpop.f32.mrf.mxu0
    %v1589 = vpop.f32.mrf.mxu0
    %v1590 = vadd.f32 0.0, %v1589
    %v1591 = vpop.f32.mrf.mxu0
    %1592 = vmatprep.mubr.bf16.mxu0 0
    %1593 = vmatmul.mubr.bf16.gmra.mxu0 %v1332
    %v1594 = vpop.f32.mrf.mxu0
    %v1595 = vadd.f32 0.0, %v1594
    %v1596 = vpop.f32.mrf.mxu0
    %v1597 = vpop.f32.mrf.mxu0
    %v1598 = vadd.f32 0.0, %v1597
    %v1599 = vpop.f32.mrf.mxu0
    %1600 = vmatprep.mubr.bf16.mxu0 0
    %1601 = vmatmul.mubr.bf16.gmra.mxu0 %v1333
    %v1602 = vpop.f32.mrf.mxu0
    %v1603 = vadd.f32 0.0, %v1602
    %v1604 = vpop.f32.mrf.mxu0
    %v1605 = vpop.f32.mrf.mxu0
    %v1606 = vadd.f32 0.0, %v1605
    %v1607 = vpop.f32.mrf.mxu0
    %1608 = vmatprep.mubr.bf16.mxu0 0
    %1609 = vmatmul.mubr.bf16.gmra.mxu0 %v1334
    %v1610 = vpop.f32.mrf.mxu0
    %v1611 = vadd.f32 0.0, %v1610
    %v1612 = vpop.f32.mrf.mxu0
    %v1613 = vpop.f32.mrf.mxu0
    %v1614 = vadd.f32 0.0, %v1613
    %v1615 = vpop.f32.mrf.mxu0
    %1616 = vdwg.mxu0
    %v1633 = vunpack.c.l.b16 %v1440
    %v1634 = vunpack.c.l.b16 %v1441
    %v1635 = vunpack.c.l.b16 %v1442
    %v1636 = vunpack.c.l.b16 %v1443
    %v1637 = vunpack.c.l.b16 %v1444
    %v1638 = vunpack.c.l.b16 %v1445
    %v1639 = vunpack.c.l.b16 %v1446
    %v1640 = vunpack.c.l.b16 %v1447
    %v1641 = vunpack.c.l.b16 %v1448
    %v1642 = vunpack.c.l.b16 %v1449
    %v1643 = vunpack.c.l.b16 %v1450
    %v1644 = vunpack.c.l.b16 %v1451
    %v1645 = vunpack.c.l.b16 %v1452
    %v1646 = vunpack.c.l.b16 %v1453
    %v1647 = vunpack.c.l.b16 %v1454
    %v1648 = vunpack.c.l.b16 %v1455
    %v1649 = vpack.c.b16 %v1634, %v1633
    %v1650 = vpack.c.b16 %v1636, %v1635
    %v1651 = vpack.c.b16 %v1638, %v1637
    %v1652 = vpack.c.b16 %v1640, %v1639
    %v1653 = vpack.c.b16 %v1642, %v1641
    %v1654 = vpack.c.b16 %v1644, %v1643
    %v1655 = vpack.c.b16 %v1646, %v1645
    %v1656 = vpack.c.b16 %v1648, %v1647
    %1665 = vmatprep.subr.bf16.mxu0 0
    %1666 = vmatpush1.bf16.msra.mxu0 %v1656
    %1667 = vmatprep.subr.bf16.mxu0 0
    %1668 = vmatpush1.bf16.msra.mxu0 %v1655
    %1669 = vmatprep.subr.bf16.mxu0 0
    %1670 = vmatpush1.bf16.msra.mxu0 %v1654
    %1671 = vmatprep.subr.bf16.mxu0 0
    %1672 = vmatpush1.bf16.msra.mxu0 %v1653
    %1673 = vmatprep.subr.bf16.mxu0 0
    %1674 = vmatpush1.bf16.msra.mxu0 %v1652
    %1675 = vmatprep.subr.bf16.mxu0 0
    %1676 = vmatpush1.bf16.msra.mxu0 %v1651
    %1677 = vmatprep.subr.bf16.mxu0 0
    %1678 = vmatpush1.bf16.msra.mxu0 %v1650
    %1679 = vmatprep.subr.bf16.mxu0 0
    %1680 = vmatpush1.bf16.msra.mxu0 %v1649
    %1681 = vmatprep.subr.bf16.mxu0 0
    %1682 = vmatpush2.bf16.msra.mxu0 0
    %1683 = vmatprep.subr.bf16.mxu0 0
    %1684 = vmatpush2.bf16.msra.mxu0 0
    %1685 = vmatprep.subr.bf16.mxu0 0
    %1686 = vmatpush2.bf16.msra.mxu0 0
    %1687 = vmatprep.subr.bf16.mxu0 0
    %1688 = vmatpush2.bf16.msra.mxu0 0
    %1689 = vmatprep.subr.bf16.mxu0 0
    %1690 = vmatpush2.bf16.msra.mxu0 0
    %1691 = vmatprep.subr.bf16.mxu0 0
    %1692 = vmatpush2.bf16.msra.mxu0 0
    %1693 = vmatprep.subr.bf16.mxu0 0
    %1694 = vmatpush2.bf16.msra.mxu0 0
    %1695 = vmatprep.subr.bf16.mxu0 0
    %1696 = vmatpush2.bf16.msra.mxu0 0
    %1697 = vmatprep.mubr.bf16.mxu0 0
    %1698 = vmatmul.mubr.bf16.gmra.mxu0 %v1432
    %v1699 = vpop.f32.mrf.mxu0
    %v1700 = vadd.f32 %v1555, %v1699
    %v1701 = vpop.f32.mrf.mxu0
    %v1702 = vpop.f32.mrf.mxu0
    %v1703 = vadd.f32 %v1558, %v1702
    %v1704 = vpop.f32.mrf.mxu0
    %1705 = vmatprep.mubr.bf16.mxu0 0
    %1706 = vmatmul.mubr.bf16.gmra.mxu0 %v1433
    %v1707 = vpop.f32.mrf.mxu0
    %v1708 = vadd.f32 %v1563, %v1707
    %v1709 = vpop.f32.mrf.mxu0
    %v1710 = vpop.f32.mrf.mxu0
    %v1711 = vadd.f32 %v1566, %v1710
    %v1712 = vpop.f32.mrf.mxu0
    %1713 = vmatprep.mubr.bf16.mxu0 0
    %1714 = vmatmul.mubr.bf16.gmra.mxu0 %v1434
    %v1715 = vpop.f32.mrf.mxu0
    %v1716 = vadd.f32 %v1571, %v1715
    %v1717 = vpop.f32.mrf.mxu0
    %v1718 = vpop.f32.mrf.mxu0
    %v1719 = vadd.f32 %v1574, %v1718
    %v1720 = vpop.f32.mrf.mxu0
    %1721 = vmatprep.mubr.bf16.mxu0 0
    %1722 = vmatmul.mubr.bf16.gmra.mxu0 %v1435
    %v1723 = vpop.f32.mrf.mxu0
    %v1724 = vadd.f32 %v1579, %v1723
    %v1725 = vpop.f32.mrf.mxu0
    %v1726 = vpop.f32.mrf.mxu0
    %v1727 = vadd.f32 %v1582, %v1726
    %v1728 = vpop.f32.mrf.mxu0
    %1729 = vmatprep.mubr.bf16.mxu0 0
    %1730 = vmatmul.mubr.bf16.gmra.mxu0 %v1436
    %v1731 = vpop.f32.mrf.mxu0
    %v1732 = vadd.f32 %v1587, %v1731
    %v1733 = vpop.f32.mrf.mxu0
    %v1734 = vpop.f32.mrf.mxu0
    %v1735 = vadd.f32 %v1590, %v1734
    %v1736 = vpop.f32.mrf.mxu0
    %1737 = vmatprep.mubr.bf16.mxu0 0
    %1738 = vmatmul.mubr.bf16.gmra.mxu0 %v1437
    %v1739 = vpop.f32.mrf.mxu0
    %v1740 = vadd.f32 %v1595, %v1739
    %v1741 = vpop.f32.mrf.mxu0
    %v1742 = vpop.f32.mrf.mxu0
    %v1743 = vadd.f32 %v1598, %v1742
    %v1744 = vpop.f32.mrf.mxu0
    %1745 = vmatprep.mubr.bf16.mxu0 0
    %1746 = vmatmul.mubr.bf16.gmra.mxu0 %v1438
    %v1747 = vpop.f32.mrf.mxu0
    %v1748 = vadd.f32 %v1603, %v1747
    %v1749 = vpop.f32.mrf.mxu0
    %v1750 = vpop.f32.mrf.mxu0
    %v1751 = vadd.f32 %v1606, %v1750
    %v1752 = vpop.f32.mrf.mxu0
    %1753 = vmatprep.mubr.bf16.mxu0 0
    %1754 = vmatmul.mubr.bf16.gmra.mxu0 %v1439
    %v1755 = vpop.f32.mrf.mxu0
    %v1756 = vadd.f32 %v1611, %v1755
    %v1757 = vpop.f32.mrf.mxu0
    %v1758 = vpop.f32.mrf.mxu0
    %v1759 = vadd.f32 %v1614, %v1758
    %v1760 = vpop.f32.mrf.mxu0
    %1761 = vdwg.mxu0
    %v1762 = vld [vmem:[%s13] sm:$0x1]
    %v1764 = vlaneseq
    %v1765 = vshrl.u32 %v1764, 7
    %v1766 = vsub.s32 0, %v1765
    %v1767 = vrot.slane %v1762, %v1766
    %v1769 = vmul.f32 %v1700, %v1767
    %v1770 = vmul.f32 %v1703, %v1767
    %v1771 = vmul.f32 %v1708, %v1767
    %v1772 = vmul.f32 %v1711, %v1767
    %v1773 = vmul.f32 %v1716, %v1767
    %v1774 = vmul.f32 %v1719, %v1767
    %v1775 = vmul.f32 %v1724, %v1767
    %v1776 = vmul.f32 %v1727, %v1767
    %v1777 = vmul.f32 %v1732, %v1767
    %v1778 = vmul.f32 %v1735, %v1767
    %v1779 = vmul.f32 %v1740, %v1767
    %v1780 = vmul.f32 %v1743, %v1767
    %v1781 = vmul.f32 %v1748, %v1767
    %v1782 = vmul.f32 %v1751, %v1767
    %v1783 = vmul.f32 %v1756, %v1767
    %v1784 = vmul.f32 %v1759, %v1767
    %v1785 = vld [vmem:[%s14] sm:$0x1]
    %v1787 = vlaneseq
    %v1788 = vshrl.u32 %v1787, 7
    %v1789 = vsub.s32 0, %v1788
    %v1790 = vrot.slane %v1785, %v1789
    %v1792 = vadd.f32 %v1769, %v1790
    %v1793 = vadd.f32 %v1770, %v1790
    %v1794 = vadd.f32 %v1771, %v1790
    %v1795 = vadd.f32 %v1772, %v1790
    %v1796 = vadd.f32 %v1773, %v1790
    %v1797 = vadd.f32 %v1774, %v1790
    %v1798 = vadd.f32 %v1775, %v1790
    %v1799 = vadd.f32 %v1776, %v1790
    %v1800 = vadd.f32 %v1777, %v1790
    %v1801 = vadd.f32 %v1778, %v1790
    %v1802 = vadd.f32 %v1779, %v1790
    %v1803 = vadd.f32 %v1780, %v1790
    %v1804 = vadd.f32 %v1781, %v1790
    %v1805 = vadd.f32 %v1782, %v1790
    %v1806 = vadd.f32 %v1783, %v1790
    %v1807 = vadd.f32 %v1784, %v1790
    %v1808 = vmax.f32 %v1792, 0.0
    %v1809 = vmax.f32 %v1793, 0.0
    %v1810 = vmax.f32 %v1794, 0.0
    %v1811 = vmax.f32 %v1795, 0.0
    %v1812 = vmax.f32 %v1796, 0.0
    %v1813 = vmax.f32 %v1797, 0.0
    %v1814 = vmax.f32 %v1798, 0.0
    %v1815 = vmax.f32 %v1799, 0.0
    %v1816 = vmax.f32 %v1800, 0.0
    %v1817 = vmax.f32 %v1801, 0.0
    %v1818 = vmax.f32 %v1802, 0.0
    %v1819 = vmax.f32 %v1803, 0.0
    %v1820 = vmax.f32 %v1804, 0.0
    %v1821 = vmax.f32 %v1805, 0.0
    %v1822 = vmax.f32 %v1806, 0.0
    %v1823 = vmax.f32 %v1807, 0.0
    %v1824 = vpack.c.bf16 %v1809, %v1808
    %v1825 = vpack.c.bf16 %v1811, %v1810
    %v1826 = vpack.c.bf16 %v1813, %v1812
    %v1827 = vpack.c.bf16 %v1815, %v1814
    %v1828 = vpack.c.bf16 %v1817, %v1816
    %v1829 = vpack.c.bf16 %v1819, %v1818
    %v1830 = vpack.c.bf16 %v1821, %v1820
    %v1831 = vpack.c.bf16 %v1823, %v1822
    %v1832 = vld [vmem:[#allocation7] sm:$0xf]
    %v1833 = vld [vmem:[#allocation7 + $0x4] sm:$0xf]
    %v1836 = vunpack.c.l.b16 %v1832
    %v1837 = vunpack.c.l.b16 %v1833
    %v1838 = vpack.c.b16 %v1837, %v1836
    %1840 = vmatprep.subr.bf16.mxu0 0
    %1841 = vmatpush1.bf16.msra.mxu0 %v1831
    %1842 = vmatprep.subr.bf16.mxu0 0
    %1843 = vmatpush1.bf16.msra.mxu0 %v1830
    %1844 = vmatprep.subr.bf16.mxu0 0
    %1845 = vmatpush1.bf16.msra.mxu0 %v1829
    %1846 = vmatprep.subr.bf16.mxu0 0
    %1847 = vmatpush1.bf16.msra.mxu0 %v1828
    %1848 = vmatprep.subr.bf16.mxu0 0
    %1849 = vmatpush1.bf16.msra.mxu0 %v1827
    %1850 = vmatprep.subr.bf16.mxu0 0
    %1851 = vmatpush1.bf16.msra.mxu0 %v1826
    %1852 = vmatprep.subr.bf16.mxu0 0
    %1853 = vmatpush1.bf16.msra.mxu0 %v1825
    %1854 = vmatprep.subr.bf16.mxu0 0
    %1855 = vmatpush1.bf16.msra.mxu0 %v1824
    %1856 = vmatprep.subr.bf16.mxu0 0
    %1857 = vmatpush2.bf16.msra.mxu0 0
    %1858 = vmatprep.subr.bf16.mxu0 0
    %1859 = vmatpush2.bf16.msra.mxu0 0
    %1860 = vmatprep.subr.bf16.mxu0 0
    %1861 = vmatpush2.bf16.msra.mxu0 0
    %1862 = vmatprep.subr.bf16.mxu0 0
    %1863 = vmatpush2.bf16.msra.mxu0 0
    %1864 = vmatprep.subr.bf16.mxu0 0
    %1865 = vmatpush2.bf16.msra.mxu0 0
    %1866 = vmatprep.subr.bf16.mxu0 0
    %1867 = vmatpush2.bf16.msra.mxu0 0
    %1868 = vmatprep.subr.bf16.mxu0 0
    %1869 = vmatpush2.bf16.msra.mxu0 0
    %1870 = vmatprep.subr.bf16.mxu0 0
    %1871 = vmatpush2.bf16.msra.mxu0 0
    %1872 = vmatprep.mubr.bf16.mxu0 0
    %1873 = vmatmul.mubr.bf16.gmra.mxu0 %v1838
    %v1874 = vpop.f32.mrf.mxu0
    %v1875 = vadd.f32 0.0, %v1874
    %v1876 = vpop.f32.mrf.mxu0
    %v1877 = vpop.f32.mrf.mxu0
    %v1878 = vadd.f32 0.0, %v1877
    %v1879 = vpop.f32.mrf.mxu0
    %1880 = vdwg.mxu0
    %v1881 = vpack.c.bf16 %v1878, %v1875
    %v1882 = vld [vmem:[#allocation17] sm:$0xf]
    %v1883 = vld [vmem:[#allocation17 + $0x4] sm:$0xf]
    %v1884 = vld [vmem:[#allocation17 + $0x8] sm:$0xf]
    %v1885 = vld [vmem:[#allocation17 + $0xc] sm:$0xf]
    %v1886 = vld [vmem:[#allocation17 + $0x10] sm:$0xf]
    %v1887 = vld [vmem:[#allocation17 + $0x14] sm:$0xf]
    %v1888 = vld [vmem:[#allocation17 + $0x18] sm:$0xf]
    %v1889 = vld [vmem:[#allocation17 + $0x1c] sm:$0xf]
    %v1890 = vld [vmem:[#allocation17 + $0x20] sm:$0xf]
    %v1891 = vld [vmem:[#allocation17 + $0x24] sm:$0xf]
    %v1892 = vld [vmem:[#allocation17 + $0x28] sm:$0xf]
    %v1893 = vld [vmem:[#allocation17 + $0x2c] sm:$0xf]
    %v1894 = vld [vmem:[#allocation17 + $0x30] sm:$0xf]
    %v1895 = vld [vmem:[#allocation17 + $0x34] sm:$0xf]
    %v1896 = vld [vmem:[#allocation17 + $0x38] sm:$0xf]
    %v1897 = vld [vmem:[#allocation17 + $0x3c] sm:$0xf]
    %v1898 = vld [vmem:[%s16] sm:$0x1]
    %v1900 = vlaneseq
    %v1901 = vshrl.u32 %v1900, 7
    %v1902 = vsub.s32 0, %v1901
    %v1903 = vrot.slane %v1898, %v1902
    %v1921 = vunpack.c.l.b16 %v1882
    %v1922 = vunpack.c.l.b16 %v1883
    %v1923 = vunpack.c.l.b16 %v1884
    %v1924 = vunpack.c.l.b16 %v1885
    %v1925 = vunpack.c.l.b16 %v1886
    %v1926 = vunpack.c.l.b16 %v1887
    %v1927 = vunpack.c.l.b16 %v1888
    %v1928 = vunpack.c.l.b16 %v1889
    %v1929 = vunpack.c.l.b16 %v1890
    %v1930 = vunpack.c.l.b16 %v1891
    %v1931 = vunpack.c.l.b16 %v1892
    %v1932 = vunpack.c.l.b16 %v1893
    %v1933 = vunpack.c.l.b16 %v1894
    %v1934 = vunpack.c.l.b16 %v1895
    %v1935 = vunpack.c.l.b16 %v1896
    %v1936 = vunpack.c.l.b16 %v1897
    %v1937 = vpack.c.b16 %v1922, %v1921
    %v1938 = vpack.c.b16 %v1924, %v1923
    %v1939 = vpack.c.b16 %v1926, %v1925
    %v1940 = vpack.c.b16 %v1928, %v1927
    %v1941 = vpack.c.b16 %v1930, %v1929
    %v1942 = vpack.c.b16 %v1932, %v1931
    %v1943 = vpack.c.b16 %v1934, %v1933
    %v1944 = vpack.c.b16 %v1936, %v1935
    %1953 = vmatprep.subr.bf16.mxu0 0
    %1954 = vmatpush1.bf16.msra.mxu0 %v1944
    %1955 = vmatprep.subr.bf16.mxu0 0
    %1956 = vmatpush1.bf16.msra.mxu0 %v1943
    %1957 = vmatprep.subr.bf16.mxu0 0
    %1958 = vmatpush1.bf16.msra.mxu0 %v1942
    %1959 = vmatprep.subr.bf16.mxu0 0
    %1960 = vmatpush1.bf16.msra.mxu0 %v1941
    %1961 = vmatprep.subr.bf16.mxu0 0
    %1962 = vmatpush1.bf16.msra.mxu0 %v1940
    %1963 = vmatprep.subr.bf16.mxu0 0
    %1964 = vmatpush1.bf16.msra.mxu0 %v1939
    %1965 = vmatprep.subr.bf16.mxu0 0
    %1966 = vmatpush1.bf16.msra.mxu0 %v1938
    %1967 = vmatprep.subr.bf16.mxu0 0
    %1968 = vmatpush1.bf16.msra.mxu0 %v1937
    %1969 = vmatprep.subr.bf16.mxu0 0
    %1970 = vmatpush2.bf16.msra.mxu0 0
    %1971 = vmatprep.subr.bf16.mxu0 0
    %1972 = vmatpush2.bf16.msra.mxu0 0
    %1973 = vmatprep.subr.bf16.mxu0 0
    %1974 = vmatpush2.bf16.msra.mxu0 0
    %1975 = vmatprep.subr.bf16.mxu0 0
    %1976 = vmatpush2.bf16.msra.mxu0 0
    %1977 = vmatprep.subr.bf16.mxu0 0
    %1978 = vmatpush2.bf16.msra.mxu0 0
    %1979 = vmatprep.subr.bf16.mxu0 0
    %1980 = vmatpush2.bf16.msra.mxu0 0
    %1981 = vmatprep.subr.bf16.mxu0 0
    %1982 = vmatpush2.bf16.msra.mxu0 0
    %1983 = vmatprep.subr.bf16.mxu0 0
    %1984 = vmatpush2.bf16.msra.mxu0 0
    %1985 = vmatprep.mubr.bf16.mxu0 0
    %1986 = vmatmul.mubr.bf16.gmra.mxu0 %v1881
    %v1987 = vpop.f32.mrf.mxu0
    %v1988 = vadd.f32 %v1903, %v1987
    %v1989 = vpop.f32.mrf.mxu0
    %v1990 = vpop.f32.mrf.mxu0
    %v1991 = vadd.f32 %v1903, %v1990
    %v1992 = vpop.f32.mrf.mxu0
    %1993 = vdwg.mxu0
    %v1994 = vmax.f32 %v1988, 0.0
    %v1995 = vmax.f32 %v1991, 0.0
    %v1996 = vpack.c.bf16 %v1995, %v1994
    %v1997 = vld [vmem:[#allocation19] sm:$0xf]
    %v1998 = vld [vmem:[#allocation19 + $0x4] sm:$0xf]
    %v1999 = vld [vmem:[#allocation19 + $0x8] sm:$0xf]
    %v2000 = vld [vmem:[#allocation19 + $0xc] sm:$0xf]
    %v2001 = vld [vmem:[#allocation19 + $0x10] sm:$0xf]
    %v2002 = vld [vmem:[#allocation19 + $0x14] sm:$0xf]
    %v2003 = vld [vmem:[#allocation19 + $0x18] sm:$0xf]
    %v2004 = vld [vmem:[#allocation19 + $0x1c] sm:$0xf]
    %v2005 = vld [vmem:[#allocation19 + $0x20] sm:$0xf]
    %v2006 = vld [vmem:[#allocation19 + $0x24] sm:$0xf]
    %v2007 = vld [vmem:[#allocation19 + $0x28] sm:$0xf]
    %v2008 = vld [vmem:[#allocation19 + $0x2c] sm:$0xf]
    %v2009 = vld [vmem:[#allocation19 + $0x30] sm:$0xf]
    %v2010 = vld [vmem:[#allocation19 + $0x34] sm:$0xf]
    %v2011 = vld [vmem:[#allocation19 + $0x38] sm:$0xf]
    %v2012 = vld [vmem:[#allocation19 + $0x3c] sm:$0xf]
    %v2013 = vld [vmem:[%s18] sm:$0x1]
    %v2015 = vlaneseq
    %v2016 = vshrl.u32 %v2015, 7
    %v2017 = vsub.s32 0, %v2016
    %v2018 = vrot.slane %v2013, %v2017
    %v2036 = vunpack.c.l.b16 %v1997
    %v2037 = vunpack.c.l.b16 %v1998
    %v2038 = vunpack.c.l.b16 %v1999
    %v2039 = vunpack.c.l.b16 %v2000
    %v2040 = vunpack.c.l.b16 %v2001
    %v2041 = vunpack.c.l.b16 %v2002
    %v2042 = vunpack.c.l.b16 %v2003
    %v2043 = vunpack.c.l.b16 %v2004
    %v2044 = vunpack.c.l.b16 %v2005
    %v2045 = vunpack.c.l.b16 %v2006
    %v2046 = vunpack.c.l.b16 %v2007
    %v2047 = vunpack.c.l.b16 %v2008
    %v2048 = vunpack.c.l.b16 %v2009
    %v2049 = vunpack.c.l.b16 %v2010
    %v2050 = vunpack.c.l.b16 %v2011
    %v2051 = vunpack.c.l.b16 %v2012
    %v2052 = vpack.c.b16 %v2037, %v2036
    %v2053 = vpack.c.b16 %v2039, %v2038
    %v2054 = vpack.c.b16 %v2041, %v2040
    %v2055 = vpack.c.b16 %v2043, %v2042
    %v2056 = vpack.c.b16 %v2045, %v2044
    %v2057 = vpack.c.b16 %v2047, %v2046
    %v2058 = vpack.c.b16 %v2049, %v2048
    %v2059 = vpack.c.b16 %v2051, %v2050
    %2068 = vmatprep.subr.bf16.mxu0 0
    %2069 = vmatpush1.bf16.msra.mxu0 %v2059
    %2070 = vmatprep.subr.bf16.mxu0 0
    %2071 = vmatpush1.bf16.msra.mxu0 %v2058
    %2072 = vmatprep.subr.bf16.mxu0 0
    %2073 = vmatpush1.bf16.msra.mxu0 %v2057
    %2074 = vmatprep.subr.bf16.mxu0 0
    %2075 = vmatpush1.bf16.msra.mxu0 %v2056
    %2076 = vmatprep.subr.bf16.mxu0 0
    %2077 = vmatpush1.bf16.msra.mxu0 %v2055
    %2078 = vmatprep.subr.bf16.mxu0 0
    %2079 = vmatpush1.bf16.msra.mxu0 %v2054
    %2080 = vmatprep.subr.bf16.mxu0 0
    %2081 = vmatpush1.bf16.msra.mxu0 %v2053
    %2082 = vmatprep.subr.bf16.mxu0 0
    %2083 = vmatpush1.bf16.msra.mxu0 %v2052
    %2084 = vmatprep.subr.bf16.mxu0 0
    %2085 = vmatpush2.bf16.msra.mxu0 0
    %2086 = vmatprep.subr.bf16.mxu0 0
    %2087 = vmatpush2.bf16.msra.mxu0 0
    %2088 = vmatprep.subr.bf16.mxu0 0
    %2089 = vmatpush2.bf16.msra.mxu0 0
    %2090 = vmatprep.subr.bf16.mxu0 0
    %2091 = vmatpush2.bf16.msra.mxu0 0
    %2092 = vmatprep.subr.bf16.mxu0 0
    %2093 = vmatpush2.bf16.msra.mxu0 0
    %2094 = vmatprep.subr.bf16.mxu0 0
    %2095 = vmatpush2.bf16.msra.mxu0 0
    %2096 = vmatprep.subr.bf16.mxu0 0
    %2097 = vmatpush2.bf16.msra.mxu0 0
    %2098 = vmatprep.subr.bf16.mxu0 0
    %2099 = vmatpush2.bf16.msra.mxu0 0
    %2100 = vmatprep.mubr.bf16.mxu0 0
    %2101 = vmatmul.mubr.bf16.gmra.mxu0 %v1996
    %v2102 = vpop.f32.mrf.mxu0
    %v2103 = vadd.f32 %v2018, %v2102
    %v2104 = vpop.f32.mrf.mxu0
    %v2105 = vpop.f32.mrf.mxu0
    %v2106 = vadd.f32 %v2018, %v2105
    %v2107 = vpop.f32.mrf.mxu0
    %2108 = vdwg.mxu0
    %2109 = vmax.xlane.f32.xlu0 %v2103
    %v2110 = vpop.xlane.xlu0 %2109
    %2111 = vmax.xlane.f32.xlu0 %v2106
    %v2112 = vpop.xlane.xlu0 %2111
    %v2113 = vsub.f32 %v2103, %v2110
    %v2114 = vsub.f32 %v2106, %v2112
    %v2115 = vmul.f32 %v2113, 1.442695
    %v2116 = vpow.pop %v2115
    %v2117 = vmul.f32 %v2114, 1.442695
    %v2118 = vpow.pop %v2117
    %2119 = vadd.xlane.f32.xlu0 %v2116
    %v2120 = vpop.xlane.xlu0 %2119
    %2121 = vadd.xlane.f32.xlu0 %v2118
    %v2122 = vpop.xlane.xlu0 %2121
    %v2123 = vlog2.pop %v2120
    %v2124 = vmul.f32 %v2123, 0.6931472
    %v2125 = vlog2.pop %v2122
    %v2126 = vmul.f32 %v2125, 0.6931472
    %v2127 = vsub.f32 %v2113, %v2124
    %v2128 = vsub.f32 %v2114, %v2126
    %2129 = vst [vmem:[#allocation20] sm:$0xff] %v2127
    %2130 = vst [vmem:[#allocation20 + $0x8] sm:$0xff] %v2128
    // Predicated region
    $region122: #{tpu_custom_call.1} parent=1 // pred_check
      _
    $region123: #{tpu_custom_call.1} parent=1 // pred_check_branch
      %2132 = sbr.rel (0) target = $region125
    $region124: #{tpu_custom_call.1} parent=1 // pred_region
      %s2134 = ssub.s32 256, 256
      %2135 = vsyncadd [#allocation4], %s2134
      %s2136 = sshll.u32 [#allocation20], 4
      %s2137 = int_to_ptr.vmem [resolvable:$true] %s2136
      %2142 = dma.vmem_to_hbm [thread:$0]  %s2137, 256, %s19, [#allocation4], 128, 128, 8
    $region125: #{tpu_custom_call.1} parent=1 // pred_fallthru
      _
    // Predicated region
    $region126: #{tpu_custom_call.1} parent=1 // pred_check
      _
    $region127: #{tpu_custom_call.1} parent=1 // pred_check_branch
      %2144 = sbr.rel (0) target = $region129
    $region128: #{tpu_custom_call.1} parent=1 // pred_region
      %2145 = dma.done [#allocation4], 256
    $region129: #{tpu_custom_call.1} parent=1 // pred_fallthru
      _
    %2146 = vsyncpa [#allocation3], 1
    %2147 = vsyncpa [#allocation6], 1
    %2148 = vsyncpa [#allocation9], 1
    %2149 = vsyncpa [#allocation12], 1
    %2150 = vsyncpa [#allocation15], 1
    %2151 = vsyncpa [#allocation18], 1
    %2152 = vsyncpa [#allocation4], 1

</llo_original>
